<compile_context>
chip_gen: v6e
topology: v6e:2x2x1
jax: 0.10.0
libtpu: 0.0.40
codegen_flags: <defaults>
</compile_context>

<pallas_src>
import functools

import jax
import jax.numpy as jnp
from jax.experimental import pallas as pl
from jax.experimental.pallas import tpu as pltpu


def _pair_lstm_kernel(x_ref,
                      wih1_ref, whh1_ref, b1_ref,
                      wih2_ref, whh2_ref, b2_ref,
                      wlin_ref, blin_ref,
                      out_ref,
                      *, hidden_dim):
    """Forward pass for one batch tile.

    x_ref   : (B, T, E)      f32   (batch tile)
    wih1    : (E, 4H)        f32   (= W_ih_l0.T)
    whh1    : (H, 4H)        f32   (= W_hh_l0.T)
    b1      : (1, 4H)        f32   (= b_ih_l0 + b_hh_l0)
    wih2    : (H, 4H)        f32   (= W_ih_l1.T)
    whh2    : (H, 4H)        f32   (= W_hh_l1.T)
    b2      : (1, 4H)        f32
    wlin    : (H, tagset)    f32   (= linear.weight.T)
    blin    : (1, tagset)    f32
    out_ref : (B, tagset)    f32
    """
    H = hidden_dim
    B, T, E = x_ref.shape
    H4 = 4 * H
    bf16 = jnp.bfloat16
    f32 = jnp.float32

    # ---- weights: explicit bf16 operands (cast once), f32 accumulation ----
    wih1 = wih1_ref[...].astype(bf16)                                    # (E, 4H)
    # Column-fused: one h1(t) push gives [h1@whh1 | h1@wih2] together.
    w1f = jnp.concatenate([whh1_ref[...], wih2_ref[...]], axis=1).astype(bf16)  # (H, 8H)
    whh2 = whh2_ref[...].astype(bf16)                                    # (H, 4H)
    wlin = wlin_ref[...].astype(bf16)                                    # (H, tagset)

    # ---- hoisted bias broadcast (single broadcast_in_dim, outside the loop) ----
    b2 = jnp.broadcast_to(b2_ref[...], (B, H4))

    # ---- hoisted layer-0 input projection (off the recurrent critical path) ----
    # One (B*T, E) x (E, 4H) matmul, b1 folded in.  T == 8 keeps the reshape
    # layout-trivial (sublane multiple).
    x2d = x_ref[...].reshape(B * T, E).astype(bf16)
    xp = jnp.dot(x2d, wih1, preferred_element_type=f32) + b1_ref[...]
    xp = xp.reshape(B, T, H4)                                            # (B, T, 4H)

    def gates(z):
        # PyTorch gate order: i, f, g, o.
        if B >= 64:
            # Large batch tile: per-slice nonlinearities (≈1.8x less EUP work).
            return (jax.nn.sigmoid(z[:, 0:H]),
                    jax.nn.sigmoid(z[:, H:2 * H]),
                    jnp.tanh(z[:, 2 * H:3 * H]),
                    jax.nn.sigmoid(z[:, 3 * H:4 * H]))
        # Tiny batch tile: fewest EUP pushes (one sigmoid + one tanh over 4H),
        # then static lane slices.
        s = jax.nn.sigmoid(z)
        th = jnp.tanh(z)
        return s[:, 0:H], s[:, H:2 * H], th[:, 2 * H:3 * H], s[:, 3 * H:4 * H]

    # Recurrent state.  Instead of carrying raw h1/h2 we carry their projections:
    #   h1rec = h1(t-1) @ whh1            (layer-0 recurrent term for step t)
    #   z2rec = h2(t-1) @ whh2 + b2       (layer-1 recurrent term; issued right
    #                                      after h2(t-1) so it overlaps the
    #                                      layer-0 cell math of step t)
    zeros_h = jnp.zeros((B, H), f32)
    h1rec = jnp.zeros((B, H4), f32)
    z2rec = b2
    c1, c2, h2 = zeros_h, zeros_h, zeros_h

    # T is static -> fully unrolled Python loop with static time indexing.
    # TODO(synk): for T >> 32, move time onto an 'arbitrary' grid axis (or use a
    # partially-unrolled fori_loop) to bound vreg live ranges.
    for t in range(T):
        # ---- layer-0 cell: no matmul left on this part of the chain ----
        z1 = xp[:, t, :] + h1rec                    # static slice (t is a Python int)
        i1, f1, g1, o1 = gates(z1)
        c1 = f1 * c1 + i1 * g1
        h1 = o1 * jnp.tanh(c1)

        # ---- single fused MXU push consuming h1(t): [h1@whh1 | h1@wih2] ----
        p = jnp.dot(h1.astype(bf16), w1f, preferred_element_type=f32)   # (B, 8H)
        h1rec = p[:, 0:H4]                          # next step's layer-0 rec. term

        # ---- layer-1 cell ----
        z2 = p[:, H4:2 * H4] + z2rec
        i2, f2, g2, o2 = gates(z2)
        c2 = f2 * c2 + i2 * g2
        h2 = o2 * jnp.tanh(c2)

        if t + 1 < T:
            # Issued immediately; independent of next step's layer-0 math, so the
            # scheduler can overlap this push with it.
            z2rec = jnp.dot(h2.astype(bf16), whh2, preferred_element_type=f32) + b2

    # lstm_out[:, -1, :] -> dropout (identity in eval) -> linear.
    # TODO(synk): training-mode dropout not applied (eval parity only).
    # TODO(synk): tagset_size == 1 makes this store lane-sparse; for long batch
    # grids present the output lane-dense in the wrapper instead.
    out_ref[...] = (jnp.dot(h2.astype(bf16), wlin, preferred_element_type=f32)
                    + blin_ref[...])


def pair_lstm_forward(x, params, hidden_dim, tagset_size, *, batch_tile=None):
    """batch_tile: batch rows per grid step.  Default = whole batch (grid of 1),
    which is right for v5e/v6e (single TensorCore; extra grid steps only add
    ~0.35 us each).  On v7x with real batches (B >= 16), pass batch_tile = B // 2
    (a multiple of 8) so the 'parallel' batch axis shards across both cores."""
    B, T, E = x.shape
    H = hidden_dim
    bt = B if batch_tile is None else batch_tile
    assert B % bt == 0, "batch_tile must divide batch"
    grid = (B // bt,)

    kernel = functools.partial(_pair_lstm_kernel, hidden_dim=H)
    H4 = 4 * H

    def const_spec(shape):
        # Weights/biases: same block every grid step -> DMA'd once, VMEM-resident.
        return pl.BlockSpec(shape, lambda i: (0, 0))

    in_specs = [
        pl.BlockSpec((bt, T, E), lambda i: (i, 0, 0)),     # x, batch-tiled
        const_spec((E, H4)),                               # wih1
        const_spec((H, H4)),                               # whh1
        const_spec((1, H4)),                               # b1
        const_spec((H, H4)),                               # wih2
        const_spec((H, H4)),                               # whh2
        const_spec((1, H4)),                               # b2
        const_spec((H, tagset_size)),                      # wlin
        const_spec((1, tagset_size)),                      # blin
    ]
    out_specs = pl.BlockSpec((bt, tagset_size), lambda i: (i, 0))

    return pl.pallas_call(
        kernel,
        out_shape=jax.ShapeDtypeStruct((B, tagset_size), jnp.float32),
        grid=grid,
        in_specs=in_specs,
        out_specs=out_specs,
        compiler_params=pltpu.CompilerParams(
            dimension_semantics=("parallel",),             # megacore batch split
            vmem_limit_bytes=32 * 1024 * 1024,             # safe on v5e/v6e/v7x
        ),
    )(x,
      params["wih1"], params["whh1"], params["b1"],
      params["wih2"], params["whh2"], params["b2"],
      params["wlin"], params["blin"])


def init_params(key, embedding_dim, hidden_dim, tagset_size):
    """Deterministic init mimicking PyTorch's U(-1/sqrt(H), 1/sqrt(H))."""
    k = 1.0 / jnp.sqrt(hidden_dim)
    keys = jax.random.split(key, 12)

    def u(kk, shape):
        return jax.random.uniform(kk, shape, jnp.float32, minval=-k, maxval=k)

    H4 = 4 * hidden_dim
    # layer 0
    wih1 = u(keys[0], (embedding_dim, H4))          # W_ih_l0.T
    whh1 = u(keys[1], (hidden_dim, H4))             # W_hh_l0.T
    b1 = u(keys[2], (1, H4)) + u(keys[3], (1, H4))  # b_ih_l0 + b_hh_l0
    # layer 1
    wih2 = u(keys[4], (hidden_dim, H4))             # W_ih_l1.T
    whh2 = u(keys[5], (hidden_dim, H4))             # W_hh_l1.T
    b2 = u(keys[6], (1, H4)) + u(keys[7], (1, H4))
    # final linear
    kl = 1.0 / jnp.sqrt(hidden_dim)
    wlin = jax.random.uniform(keys[8], (hidden_dim, tagset_size), jnp.float32,
                              minval=-kl, maxval=kl)
    blin = jax.random.uniform(keys[9], (1, tagset_size), jnp.float32,
                              minval=-kl, maxval=kl)
    return dict(wih1=wih1, whh1=whh1, b1=b1,
                wih2=wih2, whh2=whh2, b2=b2,
                wlin=wlin, blin=blin)


if __name__ == "__main__":
    # small shapes consistent with the module's forward
    batch = 2
    seq = 8
    embedding_dim = 16
    hidden_dim = 32
    tagset_size = 1

    key = jax.random.PRNGKey(0)
    k_x, k_p = jax.random.split(key)

    x = jax.random.normal(k_x, (batch, seq, embedding_dim), dtype=jnp.float32)
    params = init_params(k_p, embedding_dim, hidden_dim, tagset_size)

    out = pair_lstm_forward(x, params, hidden_dim, tagset_size)
    out = jax.block_until_ready(out)

    assert out.shape == (batch, tagset_size)
    assert out.dtype == jnp.float32
    print("KERNEL_OK")
</pallas_src>

<mosaic_0001>
module attributes {stable_mosaic.version = 11 : i64} {
  func.func @_pair_lstm_kernel(%arg0: i32, %arg1: memref<2x8x16xf32, #tpu.memory_space<vmem>>, %arg2: memref<16x128xf32, #tpu.memory_space<vmem>>, %arg3: memref<32x128xf32, #tpu.memory_space<vmem>>, %arg4: memref<1x128xf32, #tpu.memory_space<vmem>>, %arg5: memref<32x128xf32, #tpu.memory_space<vmem>>, %arg6: memref<32x128xf32, #tpu.memory_space<vmem>>, %arg7: memref<1x128xf32, #tpu.memory_space<vmem>>, %arg8: memref<32x1xf32, #tpu.memory_space<vmem>>, %arg9: memref<1x1xf32, #tpu.memory_space<vmem>>, %arg10: memref<2x1xf32, #tpu.memory_space<vmem>>) attributes {dimension_semantics = [#tpu.dimension_semantics<parallel>], iteration_bounds = array<i64: 1>, scalar_prefetch = 0 : i64, scratch_operands = 0 : i64, tpu.core_type = #tpu.core_type<tc>, window_params = [{transform_indices = @transform_0, window_bounds = array<i64: 2, 8, 16>}, {pipeline_mode = #tpu.pipeline_mode<synchronous>, transform_indices = @transform_1, window_bounds = array<i64: 16, 128>}, {pipeline_mode = #tpu.pipeline_mode<synchronous>, transform_indices = @transform_2, window_bounds = array<i64: 32, 128>}, {pipeline_mode = #tpu.pipeline_mode<synchronous>, transform_indices = @transform_3, window_bounds = array<i64: 1, 128>}, {pipeline_mode = #tpu.pipeline_mode<synchronous>, transform_indices = @transform_4, window_bounds = array<i64: 32, 128>}, {pipeline_mode = #tpu.pipeline_mode<synchronous>, transform_indices = @transform_5, window_bounds = array<i64: 32, 128>}, {pipeline_mode = #tpu.pipeline_mode<synchronous>, transform_indices = @transform_6, window_bounds = array<i64: 1, 128>}, {pipeline_mode = #tpu.pipeline_mode<synchronous>, transform_indices = @transform_7, window_bounds = array<i64: 32, 1>}, {pipeline_mode = #tpu.pipeline_mode<synchronous>, transform_indices = @transform_8, window_bounds = array<i64: 1, 1>}, {transform_indices = @transform_9, window_bounds = array<i64: 2, 1>}]} {
    %c0 = arith.constant 0 : index
    %c0_0 = arith.constant 0 : index
    %0 = vector.load %arg2[%c0, %c0_0] : memref<16x128xf32, #tpu.memory_space<vmem>>, vector<16x128xf32>
    %1 = arith.truncf %0 : vector<16x128xf32> to vector<16x128xbf16>
    %c0_1 = arith.constant 0 : index
    %c0_2 = arith.constant 0 : index
    %2 = vector.load %arg3[%c0_1, %c0_2] : memref<32x128xf32, #tpu.memory_space<vmem>>, vector<32x128xf32>
    %c0_3 = arith.constant 0 : index
    %c0_4 = arith.constant 0 : index
    %3 = vector.load %arg5[%c0_3, %c0_4] : memref<32x128xf32, #tpu.memory_space<vmem>>, vector<32x128xf32>
    %4 = tpu.concatenate %2, %3 in 1 : vector<32x128xf32>, vector<32x128xf32> -> vector<32x256xf32>
    %5 = arith.truncf %4 : vector<32x256xf32> to vector<32x256xbf16>
    %c0_5 = arith.constant 0 : index
    %c0_6 = arith.constant 0 : index
    %6 = vector.load %arg6[%c0_5, %c0_6] : memref<32x128xf32, #tpu.memory_space<vmem>>, vector<32x128xf32>
    %7 = arith.truncf %6 : vector<32x128xf32> to vector<32x128xbf16>
    %c0_7 = arith.constant 0 : index
    %c0_8 = arith.constant 0 : index
    %8 = vector.load %arg8[%c0_7, %c0_8] : memref<32x1xf32, #tpu.memory_space<vmem>>, vector<32x1xf32>
    %9 = arith.truncf %8 : vector<32x1xf32> to vector<32x1xbf16>
    %c0_9 = arith.constant 0 : index
    %c0_10 = arith.constant 0 : index
    %10 = vector.load %arg7[%c0_9, %c0_10] : memref<1x128xf32, #tpu.memory_space<vmem>>, vector<1x128xf32>
    %11 = vector.shape_cast %10 : vector<1x128xf32> to vector<1x128xf32>
    %12 = vector.broadcast %11 : vector<1x128xf32> to vector<2x128xf32>
    %c0_11 = arith.constant 0 : index
    %c0_12 = arith.constant 0 : index
    %c0_13 = arith.constant 0 : index
    %13 = vector.load %arg1[%c0_11, %c0_12, %c0_13] : memref<2x8x16xf32, #tpu.memory_space<vmem>>, vector<2x8x16xf32>
    %14 = vector.shape_cast %13 : vector<2x8x16xf32> to vector<16x16xf32>
    %15 = arith.truncf %14 : vector<16x16xf32> to vector<16x16xbf16>
    %cst = arith.constant dense<0.000000e+00> : vector<16x128xf32>
    %16 = tpu.matmul %15, %1, %cst {dimension_numbers = #tpu.dot_dimension_numbers<[1], [0], [0], [1], [0, 0, 1, 1], [], []>} : vector<16x16xbf16>, vector<16x128xbf16>, vector<16x128xf32> -> vector<16x128xf32>
    %c0_14 = arith.constant 0 : index
    %c0_15 = arith.constant 0 : index
    %17 = vector.load %arg4[%c0_14, %c0_15] : memref<1x128xf32, #tpu.memory_space<vmem>>, vector<1x128xf32>
    %18 = vector.broadcast %17 : vector<1x128xf32> to vector<16x128xf32>
    %19 = arith.addf %16, %18 : vector<16x128xf32>
    %20 = vector.shape_cast %19 : vector<16x128xf32> to vector<2x8x128xf32>
    %cst_16 = arith.constant 0.000000e+00 : f32
    %21 = vector.broadcast %cst_16 : f32 to vector<2x32xf32>
    %cst_17 = arith.constant 0.000000e+00 : f32
    %22 = vector.broadcast %cst_17 : f32 to vector<2x128xf32>
    %23 = vector.extract_strided_slice %20 {offsets = [0, 0, 0], sizes = [2, 1, 128], strides = [1, 1, 1]} : vector<2x8x128xf32> to vector<2x1x128xf32>
    %24 = vector.shape_cast %23 : vector<2x1x128xf32> to vector<2x128xf32>
    %25 = arith.addf %24, %22 : vector<2x128xf32>
    %26 = arith.negf %25 : vector<2x128xf32>
    %27 = math.exp %26 : vector<2x128xf32>
    %cst_18 = arith.constant 1.000000e+00 : f32
    %28 = vector.broadcast %cst_18 : f32 to vector<2x128xf32>
    %29 = arith.addf %28, %27 : vector<2x128xf32>
    %30 = arith.divf %28, %29 : vector<2x128xf32>
    %31 = math.tanh %25 : vector<2x128xf32>
    %32 = vector.extract_strided_slice %30 {offsets = [0, 0], sizes = [2, 32], strides = [1, 1]} : vector<2x128xf32> to vector<2x32xf32>
    %33 = vector.extract_strided_slice %30 {offsets = [0, 32], sizes = [2, 32], strides = [1, 1]} : vector<2x128xf32> to vector<2x32xf32>
    %34 = vector.extract_strided_slice %31 {offsets = [0, 64], sizes = [2, 32], strides = [1, 1]} : vector<2x128xf32> to vector<2x32xf32>
    %35 = vector.extract_strided_slice %30 {offsets = [0, 96], sizes = [2, 32], strides = [1, 1]} : vector<2x128xf32> to vector<2x32xf32>
    %36 = arith.mulf %33, %21 : vector<2x32xf32>
    %37 = arith.mulf %32, %34 : vector<2x32xf32>
    %38 = arith.addf %36, %37 : vector<2x32xf32>
    %39 = math.tanh %38 : vector<2x32xf32>
    %40 = arith.mulf %35, %39 : vector<2x32xf32>
    %41 = arith.truncf %40 : vector<2x32xf32> to vector<2x32xbf16>
    %cst_19 = arith.constant dense<0.000000e+00> : vector<2x256xf32>
    %42 = tpu.matmul %41, %5, %cst_19 {dimension_numbers = #tpu.dot_dimension_numbers<[1], [0], [0], [1], [0, 0, 1, 1], [], []>} : vector<2x32xbf16>, vector<32x256xbf16>, vector<2x256xf32> -> vector<2x256xf32>
    %43 = vector.extract_strided_slice %42 {offsets = [0, 0], sizes = [2, 128], strides = [1, 1]} : vector<2x256xf32> to vector<2x128xf32>
    %44 = vector.extract_strided_slice %42 {offsets = [0, 128], sizes = [2, 128], strides = [1, 1]} : vector<2x256xf32> to vector<2x128xf32>
    %45 = arith.addf %44, %12 : vector<2x128xf32>
    %46 = arith.negf %45 : vector<2x128xf32>
    %47 = math.exp %46 : vector<2x128xf32>
    %cst_20 = arith.constant 1.000000e+00 : f32
    %48 = vector.broadcast %cst_20 : f32 to vector<2x128xf32>
    %49 = arith.addf %48, %47 : vector<2x128xf32>
    %50 = arith.divf %48, %49 : vector<2x128xf32>
    %51 = math.tanh %45 : vector<2x128xf32>
    %52 = vector.extract_strided_slice %50 {offsets = [0, 0], sizes = [2, 32], strides = [1, 1]} : vector<2x128xf32> to vector<2x32xf32>
    %53 = vector.extract_strided_slice %50 {offsets = [0, 32], sizes = [2, 32], strides = [1, 1]} : vector<2x128xf32> to vector<2x32xf32>
    %54 = vector.extract_strided_slice %51 {offsets = [0, 64], sizes = [2, 32], strides = [1, 1]} : vector<2x128xf32> to vector<2x32xf32>
    %55 = vector.extract_strided_slice %50 {offsets = [0, 96], sizes = [2, 32], strides = [1, 1]} : vector<2x128xf32> to vector<2x32xf32>
    %56 = arith.mulf %53, %21 : vector<2x32xf32>
    %57 = arith.mulf %52, %54 : vector<2x32xf32>
    %58 = arith.addf %56, %57 : vector<2x32xf32>
    %59 = math.tanh %58 : vector<2x32xf32>
    %60 = arith.mulf %55, %59 : vector<2x32xf32>
    %61 = arith.truncf %60 : vector<2x32xf32> to vector<2x32xbf16>
    %cst_21 = arith.constant dense<0.000000e+00> : vector<2x128xf32>
    %62 = tpu.matmul %61, %7, %cst_21 {dimension_numbers = #tpu.dot_dimension_numbers<[1], [0], [0], [1], [0, 0, 1, 1], [], []>} : vector<2x32xbf16>, vector<32x128xbf16>, vector<2x128xf32> -> vector<2x128xf32>
    %63 = arith.addf %62, %12 : vector<2x128xf32>
    %64 = vector.extract_strided_slice %20 {offsets = [0, 1, 0], sizes = [2, 1, 128], strides = [1, 1, 1]} : vector<2x8x128xf32> to vector<2x1x128xf32>
    %65 = vector.shape_cast %64 : vector<2x1x128xf32> to vector<2x128xf32>
    %66 = arith.addf %65, %43 : vector<2x128xf32>
    %67 = arith.negf %66 : vector<2x128xf32>
    %68 = math.exp %67 : vector<2x128xf32>
    %cst_22 = arith.constant 1.000000e+00 : f32
    %69 = vector.broadcast %cst_22 : f32 to vector<2x128xf32>
    %70 = arith.addf %69, %68 : vector<2x128xf32>
    %71 = arith.divf %69, %70 : vector<2x128xf32>
    %72 = math.tanh %66 : vector<2x128xf32>
    %73 = vector.extract_strided_slice %71 {offsets = [0, 0], sizes = [2, 32], strides = [1, 1]} : vector<2x128xf32> to vector<2x32xf32>
    %74 = vector.extract_strided_slice %71 {offsets = [0, 32], sizes = [2, 32], strides = [1, 1]} : vector<2x128xf32> to vector<2x32xf32>
    %75 = vector.extract_strided_slice %72 {offsets = [0, 64], sizes = [2, 32], strides = [1, 1]} : vector<2x128xf32> to vector<2x32xf32>
    %76 = vector.extract_strided_slice %71 {offsets = [0, 96], sizes = [2, 32], strides = [1, 1]} : vector<2x128xf32> to vector<2x32xf32>
    %77 = arith.mulf %74, %38 : vector<2x32xf32>
    %78 = arith.mulf %73, %75 : vector<2x32xf32>
    %79 = arith.addf %77, %78 : vector<2x32xf32>
    %80 = math.tanh %79 : vector<2x32xf32>
    %81 = arith.mulf %76, %80 : vector<2x32xf32>
    %82 = arith.truncf %81 : vector<2x32xf32> to vector<2x32xbf16>
    %cst_23 = arith.constant dense<0.000000e+00> : vector<2x256xf32>
    %83 = tpu.matmul %82, %5, %cst_23 {dimension_numbers = #tpu.dot_dimension_numbers<[1], [0], [0], [1], [0, 0, 1, 1], [], []>} : vector<2x32xbf16>, vector<32x256xbf16>, vector<2x256xf32> -> vector<2x256xf32>
    %84 = vector.extract_strided_slice %83 {offsets = [0, 0], sizes = [2, 128], strides = [1, 1]} : vector<2x256xf32> to vector<2x128xf32>
    %85 = vector.extract_strided_slice %83 {offsets = [0, 128], sizes = [2, 128], strides = [1, 1]} : vector<2x256xf32> to vector<2x128xf32>
    %86 = arith.addf %85, %63 : vector<2x128xf32>
    %87 = arith.negf %86 : vector<2x128xf32>
    %88 = math.exp %87 : vector<2x128xf32>
    %cst_24 = arith.constant 1.000000e+00 : f32
    %89 = vector.broadcast %cst_24 : f32 to vector<2x128xf32>
    %90 = arith.addf %89, %88 : vector<2x128xf32>
    %91 = arith.divf %89, %90 : vector<2x128xf32>
    %92 = math.tanh %86 : vector<2x128xf32>
    %93 = vector.extract_strided_slice %91 {offsets = [0, 0], sizes = [2, 32], strides = [1, 1]} : vector<2x128xf32> to vector<2x32xf32>
    %94 = vector.extract_strided_slice %91 {offsets = [0, 32], sizes = [2, 32], strides = [1, 1]} : vector<2x128xf32> to vector<2x32xf32>
    %95 = vector.extract_strided_slice %92 {offsets = [0, 64], sizes = [2, 32], strides = [1, 1]} : vector<2x128xf32> to vector<2x32xf32>
    %96 = vector.extract_strided_slice %91 {offsets = [0, 96], sizes = [2, 32], strides = [1, 1]} : vector<2x128xf32> to vector<2x32xf32>
    %97 = arith.mulf %94, %58 : vector<2x32xf32>
    %98 = arith.mulf %93, %95 : vector<2x32xf32>
    %99 = arith.addf %97, %98 : vector<2x32xf32>
    %100 = math.tanh %99 : vector<2x32xf32>
    %101 = arith.mulf %96, %100 : vector<2x32xf32>
    %102 = arith.truncf %101 : vector<2x32xf32> to vector<2x32xbf16>
    %cst_25 = arith.constant dense<0.000000e+00> : vector<2x128xf32>
    %103 = tpu.matmul %102, %7, %cst_25 {dimension_numbers = #tpu.dot_dimension_numbers<[1], [0], [0], [1], [0, 0, 1, 1], [], []>} : vector<2x32xbf16>, vector<32x128xbf16>, vector<2x128xf32> -> vector<2x128xf32>
    %104 = arith.addf %103, %12 : vector<2x128xf32>
    %105 = vector.extract_strided_slice %20 {offsets = [0, 2, 0], sizes = [2, 1, 128], strides = [1, 1, 1]} : vector<2x8x128xf32> to vector<2x1x128xf32>
    %106 = vector.shape_cast %105 : vector<2x1x128xf32> to vector<2x128xf32>
    %107 = arith.addf %106, %84 : vector<2x128xf32>
    %108 = arith.negf %107 : vector<2x128xf32>
    %109 = math.exp %108 : vector<2x128xf32>
    %cst_26 = arith.constant 1.000000e+00 : f32
    %110 = vector.broadcast %cst_26 : f32 to vector<2x128xf32>
    %111 = arith.addf %110, %109 : vector<2x128xf32>
    %112 = arith.divf %110, %111 : vector<2x128xf32>
    %113 = math.tanh %107 : vector<2x128xf32>
    %114 = vector.extract_strided_slice %112 {offsets = [0, 0], sizes = [2, 32], strides = [1, 1]} : vector<2x128xf32> to vector<2x32xf32>
    %115 = vector.extract_strided_slice %112 {offsets = [0, 32], sizes = [2, 32], strides = [1, 1]} : vector<2x128xf32> to vector<2x32xf32>
    %116 = vector.extract_strided_slice %113 {offsets = [0, 64], sizes = [2, 32], strides = [1, 1]} : vector<2x128xf32> to vector<2x32xf32>
    %117 = vector.extract_strided_slice %112 {offsets = [0, 96], sizes = [2, 32], strides = [1, 1]} : vector<2x128xf32> to vector<2x32xf32>
    %118 = arith.mulf %115, %79 : vector<2x32xf32>
    %119 = arith.mulf %114, %116 : vector<2x32xf32>
    %120 = arith.addf %118, %119 : vector<2x32xf32>
    %121 = math.tanh %120 : vector<2x32xf32>
    %122 = arith.mulf %117, %121 : vector<2x32xf32>
    %123 = arith.truncf %122 : vector<2x32xf32> to vector<2x32xbf16>
    %cst_27 = arith.constant dense<0.000000e+00> : vector<2x256xf32>
    %124 = tpu.matmul %123, %5, %cst_27 {dimension_numbers = #tpu.dot_dimension_numbers<[1], [0], [0], [1], [0, 0, 1, 1], [], []>} : vector<2x32xbf16>, vector<32x256xbf16>, vector<2x256xf32> -> vector<2x256xf32>
    %125 = vector.extract_strided_slice %124 {offsets = [0, 0], sizes = [2, 128], strides = [1, 1]} : vector<2x256xf32> to vector<2x128xf32>
    %126 = vector.extract_strided_slice %124 {offsets = [0, 128], sizes = [2, 128], strides = [1, 1]} : vector<2x256xf32> to vector<2x128xf32>
    %127 = arith.addf %126, %104 : vector<2x128xf32>
    %128 = arith.negf %127 : vector<2x128xf32>
    %129 = math.exp %128 : vector<2x128xf32>
    %cst_28 = arith.constant 1.000000e+00 : f32
    %130 = vector.broadcast %cst_28 : f32 to vector<2x128xf32>
    %131 = arith.addf %130, %129 : vector<2x128xf32>
    %132 = arith.divf %130, %131 : vector<2x128xf32>
    %133 = math.tanh %127 : vector<2x128xf32>
    %134 = vector.extract_strided_slice %132 {offsets = [0, 0], sizes = [2, 32], strides = [1, 1]} : vector<2x128xf32> to vector<2x32xf32>
    %135 = vector.extract_strided_slice %132 {offsets = [0, 32], sizes = [2, 32], strides = [1, 1]} : vector<2x128xf32> to vector<2x32xf32>
    %136 = vector.extract_strided_slice %133 {offsets = [0, 64], sizes = [2, 32], strides = [1, 1]} : vector<2x128xf32> to vector<2x32xf32>
    %137 = vector.extract_strided_slice %132 {offsets = [0, 96], sizes = [2, 32], strides = [1, 1]} : vector<2x128xf32> to vector<2x32xf32>
    %138 = arith.mulf %135, %99 : vector<2x32xf32>
    %139 = arith.mulf %134, %136 : vector<2x32xf32>
    %140 = arith.addf %138, %139 : vector<2x32xf32>
    %141 = math.tanh %140 : vector<2x32xf32>
    %142 = arith.mulf %137, %141 : vector<2x32xf32>
    %143 = arith.truncf %142 : vector<2x32xf32> to vector<2x32xbf16>
    %cst_29 = arith.constant dense<0.000000e+00> : vector<2x128xf32>
    %144 = tpu.matmul %143, %7, %cst_29 {dimension_numbers = #tpu.dot_dimension_numbers<[1], [0], [0], [1], [0, 0, 1, 1], [], []>} : vector<2x32xbf16>, vector<32x128xbf16>, vector<2x128xf32> -> vector<2x128xf32>
    %145 = arith.addf %144, %12 : vector<2x128xf32>
    %146 = vector.extract_strided_slice %20 {offsets = [0, 3, 0], sizes = [2, 1, 128], strides = [1, 1, 1]} : vector<2x8x128xf32> to vector<2x1x128xf32>
    %147 = vector.shape_cast %146 : vector<2x1x128xf32> to vector<2x128xf32>
    %148 = arith.addf %147, %125 : vector<2x128xf32>
    %149 = arith.negf %148 : vector<2x128xf32>
    %150 = math.exp %149 : vector<2x128xf32>
    %cst_30 = arith.constant 1.000000e+00 : f32
    %151 = vector.broadcast %cst_30 : f32 to vector<2x128xf32>
    %152 = arith.addf %151, %150 : vector<2x128xf32>
    %153 = arith.divf %151, %152 : vector<2x128xf32>
    %154 = math.tanh %148 : vector<2x128xf32>
    %155 = vector.extract_strided_slice %153 {offsets = [0, 0], sizes = [2, 32], strides = [1, 1]} : vector<2x128xf32> to vector<2x32xf32>
    %156 = vector.extract_strided_slice %153 {offsets = [0, 32], sizes = [2, 32], strides = [1, 1]} : vector<2x128xf32> to vector<2x32xf32>
    %157 = vector.extract_strided_slice %154 {offsets = [0, 64], sizes = [2, 32], strides = [1, 1]} : vector<2x128xf32> to vector<2x32xf32>
    %158 = vector.extract_strided_slice %153 {offsets = [0, 96], sizes = [2, 32], strides = [1, 1]} : vector<2x128xf32> to vector<2x32xf32>
    %159 = arith.mulf %156, %120 : vector<2x32xf32>
    %160 = arith.mulf %155, %157 : vector<2x32xf32>
    %161 = arith.addf %159, %160 : vector<2x32xf32>
    %162 = math.tanh %161 : vector<2x32xf32>
    %163 = arith.mulf %158, %162 : vector<2x32xf32>
    %164 = arith.truncf %163 : vector<2x32xf32> to vector<2x32xbf16>
    %cst_31 = arith.constant dense<0.000000e+00> : vector<2x256xf32>
    %165 = tpu.matmul %164, %5, %cst_31 {dimension_numbers = #tpu.dot_dimension_numbers<[1], [0], [0], [1], [0, 0, 1, 1], [], []>} : vector<2x32xbf16>, vector<32x256xbf16>, vector<2x256xf32> -> vector<2x256xf32>
    %166 = vector.extract_strided_slice %165 {offsets = [0, 0], sizes = [2, 128], strides = [1, 1]} : vector<2x256xf32> to vector<2x128xf32>
    %167 = vector.extract_strided_slice %165 {offsets = [0, 128], sizes = [2, 128], strides = [1, 1]} : vector<2x256xf32> to vector<2x128xf32>
    %168 = arith.addf %167, %145 : vector<2x128xf32>
    %169 = arith.negf %168 : vector<2x128xf32>
    %170 = math.exp %169 : vector<2x128xf32>
    %cst_32 = arith.constant 1.000000e+00 : f32
    %171 = vector.broadcast %cst_32 : f32 to vector<2x128xf32>
    %172 = arith.addf %171, %170 : vector<2x128xf32>
    %173 = arith.divf %171, %172 : vector<2x128xf32>
    %174 = math.tanh %168 : vector<2x128xf32>
    %175 = vector.extract_strided_slice %173 {offsets = [0, 0], sizes = [2, 32], strides = [1, 1]} : vector<2x128xf32> to vector<2x32xf32>
    %176 = vector.extract_strided_slice %173 {offsets = [0, 32], sizes = [2, 32], strides = [1, 1]} : vector<2x128xf32> to vector<2x32xf32>
    %177 = vector.extract_strided_slice %174 {offsets = [0, 64], sizes = [2, 32], strides = [1, 1]} : vector<2x128xf32> to vector<2x32xf32>
    %178 = vector.extract_strided_slice %173 {offsets = [0, 96], sizes = [2, 32], strides = [1, 1]} : vector<2x128xf32> to vector<2x32xf32>
    %179 = arith.mulf %176, %140 : vector<2x32xf32>
    %180 = arith.mulf %175, %177 : vector<2x32xf32>
    %181 = arith.addf %179, %180 : vector<2x32xf32>
    %182 = math.tanh %181 : vector<2x32xf32>
    %183 = arith.mulf %178, %182 : vector<2x32xf32>
    %184 = arith.truncf %183 : vector<2x32xf32> to vector<2x32xbf16>
    %cst_33 = arith.constant dense<0.000000e+00> : vector<2x128xf32>
    %185 = tpu.matmul %184, %7, %cst_33 {dimension_numbers = #tpu.dot_dimension_numbers<[1], [0], [0], [1], [0, 0, 1, 1], [], []>} : vector<2x32xbf16>, vector<32x128xbf16>, vector<2x128xf32> -> vector<2x128xf32>
    %186 = arith.addf %185, %12 : vector<2x128xf32>
    %187 = vector.extract_strided_slice %20 {offsets = [0, 4, 0], sizes = [2, 1, 128], strides = [1, 1, 1]} : vector<2x8x128xf32> to vector<2x1x128xf32>
    %188 = vector.shape_cast %187 : vector<2x1x128xf32> to vector<2x128xf32>
    %189 = arith.addf %188, %166 : vector<2x128xf32>
    %190 = arith.negf %189 : vector<2x128xf32>
    %191 = math.exp %190 : vector<2x128xf32>
    %cst_34 = arith.constant 1.000000e+00 : f32
    %192 = vector.broadcast %cst_34 : f32 to vector<2x128xf32>
    %193 = arith.addf %192, %191 : vector<2x128xf32>
    %194 = arith.divf %192, %193 : vector<2x128xf32>
    %195 = math.tanh %189 : vector<2x128xf32>
    %196 = vector.extract_strided_slice %194 {offsets = [0, 0], sizes = [2, 32], strides = [1, 1]} : vector<2x128xf32> to vector<2x32xf32>
    %197 = vector.extract_strided_slice %194 {offsets = [0, 32], sizes = [2, 32], strides = [1, 1]} : vector<2x128xf32> to vector<2x32xf32>
    %198 = vector.extract_strided_slice %195 {offsets = [0, 64], sizes = [2, 32], strides = [1, 1]} : vector<2x128xf32> to vector<2x32xf32>
    %199 = vector.extract_strided_slice %194 {offsets = [0, 96], sizes = [2, 32], strides = [1, 1]} : vector<2x128xf32> to vector<2x32xf32>
    %200 = arith.mulf %197, %161 : vector<2x32xf32>
    %201 = arith.mulf %196, %198 : vector<2x32xf32>
    %202 = arith.addf %200, %201 : vector<2x32xf32>
    %203 = math.tanh %202 : vector<2x32xf32>
    %204 = arith.mulf %199, %203 : vector<2x32xf32>
    %205 = arith.truncf %204 : vector<2x32xf32> to vector<2x32xbf16>
    %cst_35 = arith.constant dense<0.000000e+00> : vector<2x256xf32>
    %206 = tpu.matmul %205, %5, %cst_35 {dimension_numbers = #tpu.dot_dimension_numbers<[1], [0], [0], [1], [0, 0, 1, 1], [], []>} : vector<2x32xbf16>, vector<32x256xbf16>, vector<2x256xf32> -> vector<2x256xf32>
    %207 = vector.extract_strided_slice %206 {offsets = [0, 0], sizes = [2, 128], strides = [1, 1]} : vector<2x256xf32> to vector<2x128xf32>
    %208 = vector.extract_strided_slice %206 {offsets = [0, 128], sizes = [2, 128], strides = [1, 1]} : vector<2x256xf32> to vector<2x128xf32>
    %209 = arith.addf %208, %186 : vector<2x128xf32>
    %210 = arith.negf %209 : vector<2x128xf32>
    %211 = math.exp %210 : vector<2x128xf32>
    %cst_36 = arith.constant 1.000000e+00 : f32
    %212 = vector.broadcast %cst_36 : f32 to vector<2x128xf32>
    %213 = arith.addf %212, %211 : vector<2x128xf32>
    %214 = arith.divf %212, %213 : vector<2x128xf32>
    %215 = math.tanh %209 : vector<2x128xf32>
    %216 = vector.extract_strided_slice %214 {offsets = [0, 0], sizes = [2, 32], strides = [1, 1]} : vector<2x128xf32> to vector<2x32xf32>
    %217 = vector.extract_strided_slice %214 {offsets = [0, 32], sizes = [2, 32], strides = [1, 1]} : vector<2x128xf32> to vector<2x32xf32>
    %218 = vector.extract_strided_slice %215 {offsets = [0, 64], sizes = [2, 32], strides = [1, 1]} : vector<2x128xf32> to vector<2x32xf32>
    %219 = vector.extract_strided_slice %214 {offsets = [0, 96], sizes = [2, 32], strides = [1, 1]} : vector<2x128xf32> to vector<2x32xf32>
    %220 = arith.mulf %217, %181 : vector<2x32xf32>
    %221 = arith.mulf %216, %218 : vector<2x32xf32>
    %222 = arith.addf %220, %221 : vector<2x32xf32>
    %223 = math.tanh %222 : vector<2x32xf32>
    %224 = arith.mulf %219, %223 : vector<2x32xf32>
    %225 = arith.truncf %224 : vector<2x32xf32> to vector<2x32xbf16>
    %cst_37 = arith.constant dense<0.000000e+00> : vector<2x128xf32>
    %226 = tpu.matmul %225, %7, %cst_37 {dimension_numbers = #tpu.dot_dimension_numbers<[1], [0], [0], [1], [0, 0, 1, 1], [], []>} : vector<2x32xbf16>, vector<32x128xbf16>, vector<2x128xf32> -> vector<2x128xf32>
    %227 = arith.addf %226, %12 : vector<2x128xf32>
    %228 = vector.extract_strided_slice %20 {offsets = [0, 5, 0], sizes = [2, 1, 128], strides = [1, 1, 1]} : vector<2x8x128xf32> to vector<2x1x128xf32>
    %229 = vector.shape_cast %228 : vector<2x1x128xf32> to vector<2x128xf32>
    %230 = arith.addf %229, %207 : vector<2x128xf32>
    %231 = arith.negf %230 : vector<2x128xf32>
    %232 = math.exp %231 : vector<2x128xf32>
    %cst_38 = arith.constant 1.000000e+00 : f32
    %233 = vector.broadcast %cst_38 : f32 to vector<2x128xf32>
    %234 = arith.addf %233, %232 : vector<2x128xf32>
    %235 = arith.divf %233, %234 : vector<2x128xf32>
    %236 = math.tanh %230 : vector<2x128xf32>
    %237 = vector.extract_strided_slice %235 {offsets = [0, 0], sizes = [2, 32], strides = [1, 1]} : vector<2x128xf32> to vector<2x32xf32>
    %238 = vector.extract_strided_slice %235 {offsets = [0, 32], sizes = [2, 32], strides = [1, 1]} : vector<2x128xf32> to vector<2x32xf32>
    %239 = vector.extract_strided_slice %236 {offsets = [0, 64], sizes = [2, 32], strides = [1, 1]} : vector<2x128xf32> to vector<2x32xf32>
    %240 = vector.extract_strided_slice %235 {offsets = [0, 96], sizes = [2, 32], strides = [1, 1]} : vector<2x128xf32> to vector<2x32xf32>
    %241 = arith.mulf %238, %202 : vector<2x32xf32>
    %242 = arith.mulf %237, %239 : vector<2x32xf32>
    %243 = arith.addf %241, %242 : vector<2x32xf32>
    %244 = math.tanh %243 : vector<2x32xf32>
    %245 = arith.mulf %240, %244 : vector<2x32xf32>
    %246 = arith.truncf %245 : vector<2x32xf32> to vector<2x32xbf16>
    %cst_39 = arith.constant dense<0.000000e+00> : vector<2x256xf32>
    %247 = tpu.matmul %246, %5, %cst_39 {dimension_numbers = #tpu.dot_dimension_numbers<[1], [0], [0], [1], [0, 0, 1, 1], [], []>} : vector<2x32xbf16>, vector<32x256xbf16>, vector<2x256xf32> -> vector<2x256xf32>
    %248 = vector.extract_strided_slice %247 {offsets = [0, 0], sizes = [2, 128], strides = [1, 1]} : vector<2x256xf32> to vector<2x128xf32>
    %249 = vector.extract_strided_slice %247 {offsets = [0, 128], sizes = [2, 128], strides = [1, 1]} : vector<2x256xf32> to vector<2x128xf32>
    %250 = arith.addf %249, %227 : vector<2x128xf32>
    %251 = arith.negf %250 : vector<2x128xf32>
    %252 = math.exp %251 : vector<2x128xf32>
    %cst_40 = arith.constant 1.000000e+00 : f32
    %253 = vector.broadcast %cst_40 : f32 to vector<2x128xf32>
    %254 = arith.addf %253, %252 : vector<2x128xf32>
    %255 = arith.divf %253, %254 : vector<2x128xf32>
    %256 = math.tanh %250 : vector<2x128xf32>
    %257 = vector.extract_strided_slice %255 {offsets = [0, 0], sizes = [2, 32], strides = [1, 1]} : vector<2x128xf32> to vector<2x32xf32>
    %258 = vector.extract_strided_slice %255 {offsets = [0, 32], sizes = [2, 32], strides = [1, 1]} : vector<2x128xf32> to vector<2x32xf32>
    %259 = vector.extract_strided_slice %256 {offsets = [0, 64], sizes = [2, 32], strides = [1, 1]} : vector<2x128xf32> to vector<2x32xf32>
    %260 = vector.extract_strided_slice %255 {offsets = [0, 96], sizes = [2, 32], strides = [1, 1]} : vector<2x128xf32> to vector<2x32xf32>
    %261 = arith.mulf %258, %222 : vector<2x32xf32>
    %262 = arith.mulf %257, %259 : vector<2x32xf32>
    %263 = arith.addf %261, %262 : vector<2x32xf32>
    %264 = math.tanh %263 : vector<2x32xf32>
    %265 = arith.mulf %260, %264 : vector<2x32xf32>
    %266 = arith.truncf %265 : vector<2x32xf32> to vector<2x32xbf16>
    %cst_41 = arith.constant dense<0.000000e+00> : vector<2x128xf32>
    %267 = tpu.matmul %266, %7, %cst_41 {dimension_numbers = #tpu.dot_dimension_numbers<[1], [0], [0], [1], [0, 0, 1, 1], [], []>} : vector<2x32xbf16>, vector<32x128xbf16>, vector<2x128xf32> -> vector<2x128xf32>
    %268 = arith.addf %267, %12 : vector<2x128xf32>
    %269 = vector.extract_strided_slice %20 {offsets = [0, 6, 0], sizes = [2, 1, 128], strides = [1, 1, 1]} : vector<2x8x128xf32> to vector<2x1x128xf32>
    %270 = vector.shape_cast %269 : vector<2x1x128xf32> to vector<2x128xf32>
    %271 = arith.addf %270, %248 : vector<2x128xf32>
    %272 = arith.negf %271 : vector<2x128xf32>
    %273 = math.exp %272 : vector<2x128xf32>
    %cst_42 = arith.constant 1.000000e+00 : f32
    %274 = vector.broadcast %cst_42 : f32 to vector<2x128xf32>
    %275 = arith.addf %274, %273 : vector<2x128xf32>
    %276 = arith.divf %274, %275 : vector<2x128xf32>
    %277 = math.tanh %271 : vector<2x128xf32>
    %278 = vector.extract_strided_slice %276 {offsets = [0, 0], sizes = [2, 32], strides = [1, 1]} : vector<2x128xf32> to vector<2x32xf32>
    %279 = vector.extract_strided_slice %276 {offsets = [0, 32], sizes = [2, 32], strides = [1, 1]} : vector<2x128xf32> to vector<2x32xf32>
    %280 = vector.extract_strided_slice %277 {offsets = [0, 64], sizes = [2, 32], strides = [1, 1]} : vector<2x128xf32> to vector<2x32xf32>
    %281 = vector.extract_strided_slice %276 {offsets = [0, 96], sizes = [2, 32], strides = [1, 1]} : vector<2x128xf32> to vector<2x32xf32>
    %282 = arith.mulf %279, %243 : vector<2x32xf32>
    %283 = arith.mulf %278, %280 : vector<2x32xf32>
    %284 = arith.addf %282, %283 : vector<2x32xf32>
    %285 = math.tanh %284 : vector<2x32xf32>
    %286 = arith.mulf %281, %285 : vector<2x32xf32>
    %287 = arith.truncf %286 : vector<2x32xf32> to vector<2x32xbf16>
    %cst_43 = arith.constant dense<0.000000e+00> : vector<2x256xf32>
    %288 = tpu.matmul %287, %5, %cst_43 {dimension_numbers = #tpu.dot_dimension_numbers<[1], [0], [0], [1], [0, 0, 1, 1], [], []>} : vector<2x32xbf16>, vector<32x256xbf16>, vector<2x256xf32> -> vector<2x256xf32>
    %289 = vector.extract_strided_slice %288 {offsets = [0, 0], sizes = [2, 128], strides = [1, 1]} : vector<2x256xf32> to vector<2x128xf32>
    %290 = vector.extract_strided_slice %288 {offsets = [0, 128], sizes = [2, 128], strides = [1, 1]} : vector<2x256xf32> to vector<2x128xf32>
    %291 = arith.addf %290, %268 : vector<2x128xf32>
    %292 = arith.negf %291 : vector<2x128xf32>
    %293 = math.exp %292 : vector<2x128xf32>
    %cst_44 = arith.constant 1.000000e+00 : f32
    %294 = vector.broadcast %cst_44 : f32 to vector<2x128xf32>
    %295 = arith.addf %294, %293 : vector<2x128xf32>
    %296 = arith.divf %294, %295 : vector<2x128xf32>
    %297 = math.tanh %291 : vector<2x128xf32>
    %298 = vector.extract_strided_slice %296 {offsets = [0, 0], sizes = [2, 32], strides = [1, 1]} : vector<2x128xf32> to vector<2x32xf32>
    %299 = vector.extract_strided_slice %296 {offsets = [0, 32], sizes = [2, 32], strides = [1, 1]} : vector<2x128xf32> to vector<2x32xf32>
    %300 = vector.extract_strided_slice %297 {offsets = [0, 64], sizes = [2, 32], strides = [1, 1]} : vector<2x128xf32> to vector<2x32xf32>
    %301 = vector.extract_strided_slice %296 {offsets = [0, 96], sizes = [2, 32], strides = [1, 1]} : vector<2x128xf32> to vector<2x32xf32>
    %302 = arith.mulf %299, %263 : vector<2x32xf32>
    %303 = arith.mulf %298, %300 : vector<2x32xf32>
    %304 = arith.addf %302, %303 : vector<2x32xf32>
    %305 = math.tanh %304 : vector<2x32xf32>
    %306 = arith.mulf %301, %305 : vector<2x32xf32>
    %307 = arith.truncf %306 : vector<2x32xf32> to vector<2x32xbf16>
    %cst_45 = arith.constant dense<0.000000e+00> : vector<2x128xf32>
    %308 = tpu.matmul %307, %7, %cst_45 {dimension_numbers = #tpu.dot_dimension_numbers<[1], [0], [0], [1], [0, 0, 1, 1], [], []>} : vector<2x32xbf16>, vector<32x128xbf16>, vector<2x128xf32> -> vector<2x128xf32>
    %309 = arith.addf %308, %12 : vector<2x128xf32>
    %310 = vector.extract_strided_slice %20 {offsets = [0, 7, 0], sizes = [2, 1, 128], strides = [1, 1, 1]} : vector<2x8x128xf32> to vector<2x1x128xf32>
    %311 = vector.shape_cast %310 : vector<2x1x128xf32> to vector<2x128xf32>
    %312 = arith.addf %311, %289 : vector<2x128xf32>
    %313 = arith.negf %312 : vector<2x128xf32>
    %314 = math.exp %313 : vector<2x128xf32>
    %cst_46 = arith.constant 1.000000e+00 : f32
    %315 = vector.broadcast %cst_46 : f32 to vector<2x128xf32>
    %316 = arith.addf %315, %314 : vector<2x128xf32>
    %317 = arith.divf %315, %316 : vector<2x128xf32>
    %318 = math.tanh %312 : vector<2x128xf32>
    %319 = vector.extract_strided_slice %317 {offsets = [0, 0], sizes = [2, 32], strides = [1, 1]} : vector<2x128xf32> to vector<2x32xf32>
    %320 = vector.extract_strided_slice %317 {offsets = [0, 32], sizes = [2, 32], strides = [1, 1]} : vector<2x128xf32> to vector<2x32xf32>
    %321 = vector.extract_strided_slice %318 {offsets = [0, 64], sizes = [2, 32], strides = [1, 1]} : vector<2x128xf32> to vector<2x32xf32>
    %322 = vector.extract_strided_slice %317 {offsets = [0, 96], sizes = [2, 32], strides = [1, 1]} : vector<2x128xf32> to vector<2x32xf32>
    %323 = arith.mulf %320, %284 : vector<2x32xf32>
    %324 = arith.mulf %319, %321 : vector<2x32xf32>
    %325 = arith.addf %323, %324 : vector<2x32xf32>
    %326 = math.tanh %325 : vector<2x32xf32>
    %327 = arith.mulf %322, %326 : vector<2x32xf32>
    %328 = arith.truncf %327 : vector<2x32xf32> to vector<2x32xbf16>
    %cst_47 = arith.constant dense<0.000000e+00> : vector<2x256xf32>
    %329 = tpu.matmul %328, %5, %cst_47 {dimension_numbers = #tpu.dot_dimension_numbers<[1], [0], [0], [1], [0, 0, 1, 1], [], []>} : vector<2x32xbf16>, vector<32x256xbf16>, vector<2x256xf32> -> vector<2x256xf32>
    %330 = vector.extract_strided_slice %329 {offsets = [0, 128], sizes = [2, 128], strides = [1, 1]} : vector<2x256xf32> to vector<2x128xf32>
    %331 = arith.addf %330, %309 : vector<2x128xf32>
    %332 = arith.negf %331 : vector<2x128xf32>
    %333 = math.exp %332 : vector<2x128xf32>
    %cst_48 = arith.constant 1.000000e+00 : f32
    %334 = vector.broadcast %cst_48 : f32 to vector<2x128xf32>
    %335 = arith.addf %334, %333 : vector<2x128xf32>
    %336 = arith.divf %334, %335 : vector<2x128xf32>
    %337 = math.tanh %331 : vector<2x128xf32>
    %338 = vector.extract_strided_slice %336 {offsets = [0, 0], sizes = [2, 32], strides = [1, 1]} : vector<2x128xf32> to vector<2x32xf32>
    %339 = vector.extract_strided_slice %336 {offsets = [0, 32], sizes = [2, 32], strides = [1, 1]} : vector<2x128xf32> to vector<2x32xf32>
    %340 = vector.extract_strided_slice %337 {offsets = [0, 64], sizes = [2, 32], strides = [1, 1]} : vector<2x128xf32> to vector<2x32xf32>
    %341 = vector.extract_strided_slice %336 {offsets = [0, 96], sizes = [2, 32], strides = [1, 1]} : vector<2x128xf32> to vector<2x32xf32>
    %342 = arith.mulf %339, %304 : vector<2x32xf32>
    %343 = arith.mulf %338, %340 : vector<2x32xf32>
    %344 = arith.addf %342, %343 : vector<2x32xf32>
    %345 = math.tanh %344 : vector<2x32xf32>
    %346 = arith.mulf %341, %345 : vector<2x32xf32>
    %347 = arith.truncf %346 : vector<2x32xf32> to vector<2x32xbf16>
    %cst_49 = arith.constant dense<0.000000e+00> : vector<2x1xf32>
    %348 = tpu.matmul %347, %9, %cst_49 {dimension_numbers = #tpu.dot_dimension_numbers<[1], [0], [0], [1], [0, 0, 1, 1], [], []>} : vector<2x32xbf16>, vector<32x1xbf16>, vector<2x1xf32> -> vector<2x1xf32>
    %c0_50 = arith.constant 0 : index
    %c0_51 = arith.constant 0 : index
    %349 = vector.load %arg9[%c0_50, %c0_51] : memref<1x1xf32, #tpu.memory_space<vmem>>, vector<1x1xf32>
    %350 = vector.broadcast %349 : vector<1x1xf32> to vector<2x1xf32>
    %351 = arith.addf %348, %350 : vector<2x1xf32>
    %c0_52 = arith.constant 0 : index
    %c0_53 = arith.constant 0 : index
    %352 = vector.load %arg10[%c0_52, %c0_53] : memref<2x1xf32, #tpu.memory_space<vmem>>, vector<2x1xf32>
    tpu.vector_store %arg10[%c0_52, %c0_53], %351 {strides = array<i32>} : memref<2x1xf32, #tpu.memory_space<vmem>>, vector<2x1xf32>,
    return
  }
  func.func @transform_0(%arg0: i32) -> (i32, i32, i32) {
    %c0_i32 = arith.constant 0 : i32
    %c0_i32_0 = arith.constant 0 : i32
    %c0_i32_1 = arith.constant 0 : i32
    return %arg0, %c0_i32, %c0_i32_0 : i32, i32, i32
  }
  func.func @transform_1(%arg0: i32) -> (i32, i32) {
    %c0_i32 = arith.constant 0 : i32
    %c0_i32_0 = arith.constant 0 : i32
    %c0_i32_1 = arith.constant 0 : i32
    return %c0_i32, %c0_i32_0 : i32, i32
  }
  func.func @transform_2(%arg0: i32) -> (i32, i32) {
    %c0_i32 = arith.constant 0 : i32
    %c0_i32_0 = arith.constant 0 : i32
    %c0_i32_1 = arith.constant 0 : i32
    return %c0_i32, %c0_i32_0 : i32, i32
  }
  func.func @transform_3(%arg0: i32) -> (i32, i32) {
    %c0_i32 = arith.constant 0 : i32
    %c0_i32_0 = arith.constant 0 : i32
    %c0_i32_1 = arith.constant 0 : i32
    return %c0_i32, %c0_i32_0 : i32, i32
  }
  func.func @transform_4(%arg0: i32) -> (i32, i32) {
    %c0_i32 = arith.constant 0 : i32
    %c0_i32_0 = arith.constant 0 : i32
    %c0_i32_1 = arith.constant 0 : i32
    return %c0_i32, %c0_i32_0 : i32, i32
  }
  func.func @transform_5(%arg0: i32) -> (i32, i32) {
    %c0_i32 = arith.constant 0 : i32
    %c0_i32_0 = arith.constant 0 : i32
    %c0_i32_1 = arith.constant 0 : i32
    return %c0_i32, %c0_i32_0 : i32, i32
  }
  func.func @transform_6(%arg0: i32) -> (i32, i32) {
    %c0_i32 = arith.constant 0 : i32
    %c0_i32_0 = arith.constant 0 : i32
    %c0_i32_1 = arith.constant 0 : i32
    return %c0_i32, %c0_i32_0 : i32, i32
  }
  func.func @transform_7(%arg0: i32) -> (i32, i32) {
    %c0_i32 = arith.constant 0 : i32
    %c0_i32_0 = arith.constant 0 : i32
    %c0_i32_1 = arith.constant 0 : i32
    return %c0_i32, %c0_i32_0 : i32, i32
  }
  func.func @transform_8(%arg0: i32) -> (i32, i32) {
    %c0_i32 = arith.constant 0 : i32
    %c0_i32_0 = arith.constant 0 : i32
    %c0_i32_1 = arith.constant 0 : i32
    return %c0_i32, %c0_i32_0 : i32, i32
  }
  func.func @transform_9(%arg0: i32) -> (i32, i32) {
    %c0_i32 = arith.constant 0 : i32
    %c0_i32_0 = arith.constant 0 : i32
    return %arg0, %c0_i32 : i32, i32
  }
}

</mosaic_0001>

<llo_original>
// kernel: tpu_custom_call.1
$region0: #{tpu_custom_call.1}
  #allocation0 [shape = 'u32[]', space=smem, size = 0x4, offset = 0x4, fixed_abs, tag = 'smem constant byte address 0x4 - core index']
  #allocation1 [shape = 'u32[144,128]{1,0:T(1,128)}', space=vmem, size = 0x12000, scoped, tag = 'internal scratch']
  #allocation2 [shape = 'f32[1,1]{1,0:T(1,128)S(1)}', space=vmem, size = 0x200, scoped, tag = 'scoped memory for tpu_custom_call.1']
  %s0 = inlined_call_operand.hbm [shape: f32[2,8,16], index: 0, kind: input, shape index: {}]
  %s1 = inlined_call_operand.hbm [shape: f32[16,128], index: 1, kind: input, shape index: {}]
  %s2 = inlined_call_operand.vmem [shape: f32[32,128], index: 2, kind: input, shape index: {}]
  %s3 = inlined_call_operand.vmem [shape: f32[1,128], index: 3, kind: input, shape index: {}]
  %s4 = inlined_call_operand.hbm [shape: f32[32,128], index: 4, kind: input, shape index: {}]
  %s5 = inlined_call_operand.hbm [shape: f32[32,128], index: 5, kind: input, shape index: {}]
  %s6 = inlined_call_operand.vmem [shape: f32[1,128], index: 6, kind: input, shape index: {}]
  %s7 = inlined_call_operand.vmem [shape: f32[32,1], index: 7, kind: input, shape index: {}]
  %s8 = inlined_call_operand.<no memory space> [shape: f32[1,1], index: 8, kind: input, shape index: {}]
  %s9 = inlined_call_operand.vmem [shape: f32[2,1], index: 9, kind: output, shape index: {}]
  %s10 = sld [smem:[#allocation0]]
  $region62: #{tpu_custom_call.1} parent=0
    _
  %s12 = ssub.s32 1, %s10
  %s13 = scalar_select 0, %s12, %s10
  %v14 = vstv %s8
  %15 = vst [vmem:[#allocation2] sm:$0x1] %v14
  $region1: #{tpu_custom_call.1} parent=0
    #allocation3 [shape = 'u8[8192]{0}', space=vmem, size = 0x2000, scoped, tag = 'input window, operand 0, single buffered']
    #allocation4 [shape = 's32[1]{0}', space=sflag, size = 0x4, scoped, tag = 'scoped memory for tpu_custom_call.1']
    #allocation5 [shape = 'u8[8192]{0}', space=vmem, size = 0x2000, scoped, tag = 'input window, operand 1, single buffered']
    #allocation6 [shape = 's32[1]{0}', space=sflag, size = 0x4, scoped, tag = 'scoped memory for tpu_custom_call.1']
    #allocation7 [shape = 'u8[16384]{0}', space=vmem, size = 0x4000, scoped, tag = 'input window, operand 4, single buffered']
    #allocation8 [shape = 'u8[16384]{0}', space=vmem, size = 0x4000, scoped, tag = 'input window, operand 5, single buffered']
    #allocation9 [shape = 's32[1]{0}', space=sflag, size = 0x4, scoped, tag = 'scoped memory for tpu_custom_call.1']
    %16 = vsyncpa [#allocation4], 0
    %17 = vsyncpa [#allocation6], 0
    %18 = vsyncpa [#allocation9], 0
    // Predicated region
    $region2: #{tpu_custom_call.1} parent=1 // pred_check
      _
    $region3: #{tpu_custom_call.1} parent=1 // pred_check_branch
      %20 = sbr.rel (0) target = $region5
    $region4: #{tpu_custom_call.1} parent=1 // pred_region
      %s22 = ssub.s32 256, 256
      %23 = vsyncadd [#allocation4], %s22
      %s24 = sshll.u32 [#allocation3], 4
      %s25 = int_to_ptr.vmem [resolvable:$true] %s24
      %30 = dma.hbm_to_vmem [thread:$0]  %s0, 256, %s25, [#allocation4], 128, 128, 8
    $region5: #{tpu_custom_call.1} parent=1 // pred_fallthru
      _
    // Predicated region
    $region6: #{tpu_custom_call.1} parent=1 // pred_check
      _
    $region7: #{tpu_custom_call.1} parent=1 // pred_check_branch
      %32 = sbr.rel (0) target = $region9
    $region8: #{tpu_custom_call.1} parent=1 // pred_region
      %s34 = ssub.s32 256, 256
      %35 = vsyncadd [#allocation6], %s34
      %s36 = sshll.u32 [#allocation5], 4
      %s37 = int_to_ptr.vmem [resolvable:$true] %s36
      %42 = dma.hbm_to_vmem [thread:$0]  %s1, 256, %s37, [#allocation6], 128, 128, 8
    $region9: #{tpu_custom_call.1} parent=1 // pred_fallthru
      _
    // Predicated region
    $region10: #{tpu_custom_call.1} parent=1 // pred_check
      _
    $region11: #{tpu_custom_call.1} parent=1 // pred_check_branch
      %44 = sbr.rel (0) target = $region13
    $region12: #{tpu_custom_call.1} parent=1 // pred_region
      _
    $region13: #{tpu_custom_call.1} parent=1 // pred_fallthru
      _
    // Predicated region
    $region14: #{tpu_custom_call.1} parent=1 // pred_check
      _
    $region15: #{tpu_custom_call.1} parent=1 // pred_check_branch
      %46 = sbr.rel (0) target = $region17
    $region16: #{tpu_custom_call.1} parent=1 // pred_region
      _
    $region17: #{tpu_custom_call.1} parent=1 // pred_fallthru
      _
    // Predicated region
    $region18: #{tpu_custom_call.1} parent=1 // pred_check
      _
    $region19: #{tpu_custom_call.1} parent=1 // pred_check_branch
      %48 = sbr.rel (0) target = $region21
    $region20: #{tpu_custom_call.1} parent=1 // pred_region
      %s50 = ssub.s32 512, 512
      %51 = vsyncadd [#allocation6], %s50
      %s52 = sshll.u32 [#allocation7], 4
      %s53 = int_to_ptr.vmem [resolvable:$true] %s52
      %58 = dma.hbm_to_vmem [thread:$0]  %s4, 512, %s53, [#allocation6], 128, 128, 8
    $region21: #{tpu_custom_call.1} parent=1 // pred_fallthru
      _
    // Predicated region
    $region22: #{tpu_custom_call.1} parent=1 // pred_check
      _
    $region23: #{tpu_custom_call.1} parent=1 // pred_check_branch
      %60 = sbr.rel (0) target = $region25
    $region24: #{tpu_custom_call.1} parent=1 // pred_region
      %s62 = ssub.s32 512, 512
      %63 = vsyncadd [#allocation9], %s62
      %s64 = sshll.u32 [#allocation8], 4
      %s65 = int_to_ptr.vmem [resolvable:$true] %s64
      %70 = dma.hbm_to_vmem [thread:$0]  %s5, 512, %s65, [#allocation9], 128, 128, 8
    $region25: #{tpu_custom_call.1} parent=1 // pred_fallthru
      _
    // Predicated region
    $region26: #{tpu_custom_call.1} parent=1 // pred_check
      _
    $region27: #{tpu_custom_call.1} parent=1 // pred_check_branch
      %72 = sbr.rel (0) target = $region29
    $region28: #{tpu_custom_call.1} parent=1 // pred_region
      _
    $region29: #{tpu_custom_call.1} parent=1 // pred_fallthru
      _
    // Predicated region
    $region30: #{tpu_custom_call.1} parent=1 // pred_check
      _
    $region31: #{tpu_custom_call.1} parent=1 // pred_check_branch
      %74 = sbr.rel (0) target = $region33
    $region32: #{tpu_custom_call.1} parent=1 // pred_region
      _
    $region33: #{tpu_custom_call.1} parent=1 // pred_fallthru
      _
    // Predicated region
    $region34: #{tpu_custom_call.1} parent=1 // pred_check
      _
    $region35: #{tpu_custom_call.1} parent=1 // pred_check_branch
      %76 = sbr.rel (0) target = $region37
    $region36: #{tpu_custom_call.1} parent=1 // pred_region
      _
    $region37: #{tpu_custom_call.1} parent=1 // pred_fallthru
      _
    // Predicated region
    $region38: #{tpu_custom_call.1} parent=1 // pred_check
      _
    $region39: #{tpu_custom_call.1} parent=1 // pred_check_branch
      %78 = sbr.rel (0) target = $region41
    $region40: #{tpu_custom_call.1} parent=1 // pred_region
      %79 = dma.done [#allocation4], 256
    $region41: #{tpu_custom_call.1} parent=1 // pred_fallthru
      _
    // Predicated region
    $region42: #{tpu_custom_call.1} parent=1 // pred_check
      _
    $region43: #{tpu_custom_call.1} parent=1 // pred_check_branch
      %81 = sbr.rel (0) target = $region45
    $region44: #{tpu_custom_call.1} parent=1 // pred_region
      %82 = dma.done [#allocation6], 256
    $region45: #{tpu_custom_call.1} parent=1 // pred_fallthru
      _
    // Predicated region
    $region46: #{tpu_custom_call.1} parent=1 // pred_check
      _
    $region47: #{tpu_custom_call.1} parent=1 // pred_check_branch
      %84 = sbr.rel (0) target = $region49
    $region48: #{tpu_custom_call.1} parent=1 // pred_region
      %85 = dma.done [#allocation6], 512
    $region49: #{tpu_custom_call.1} parent=1 // pred_fallthru
      _
    // Predicated region
    $region50: #{tpu_custom_call.1} parent=1 // pred_check
      _
    $region51: #{tpu_custom_call.1} parent=1 // pred_check_branch
      %87 = sbr.rel (0) target = $region53
    $region52: #{tpu_custom_call.1} parent=1 // pred_region
      %88 = dma.done [#allocation9], 512
    $region53: #{tpu_custom_call.1} parent=1 // pred_fallthru
      _
    %v90 = vld [vmem:[#allocation5] sm:$0xff]
    %v91 = vld [vmem:[#allocation5 + $0x8] sm:$0xff]
    %v92 = vpack.c.bf16 %v91, %v90
    %v93 = vld [vmem:[%s2] sm:$0xff]
    %v94 = vld [vmem:[%s2 + $0x8] sm:$0xff]
    %v95 = vld [vmem:[%s2 + $0x10] sm:$0xff]
    %v96 = vld [vmem:[%s2 + $0x18] sm:$0xff]
    %v97 = vld [vmem:[#allocation7] sm:$0xff]
    %v98 = vld [vmem:[#allocation7 + $0x8] sm:$0xff]
    %v99 = vld [vmem:[#allocation7 + $0x10] sm:$0xff]
    %v100 = vld [vmem:[#allocation7 + $0x18] sm:$0xff]
    %v101 = vpack.c.bf16 %v94, %v93
    %v102 = vpack.c.bf16 %v98, %v97
    %v103 = vpack.c.bf16 %v96, %v95
    %v104 = vpack.c.bf16 %v100, %v99
    %v105 = vld [vmem:[#allocation8] sm:$0xff]
    %v106 = vld [vmem:[#allocation8 + $0x8] sm:$0xff]
    %v107 = vld [vmem:[#allocation8 + $0x10] sm:$0xff]
    %v108 = vld [vmem:[#allocation8 + $0x18] sm:$0xff]
    %v109 = vpack.c.bf16 %v106, %v105
    %v110 = vpack.c.bf16 %v108, %v107
    %v111 = vld [vmem:[%s7] sm:$0xff]
    %v112 = vld [vmem:[%s7 + $0x8] sm:$0xff]
    %v113 = vld [vmem:[%s7 + $0x10] sm:$0xff]
    %v114 = vld [vmem:[%s7 + $0x18] sm:$0xff]
    %v115 = vpack.c.bf16 %v112, %v111
    %v116 = vpack.c.bf16 %v114, %v113
    %v117 = vld [vmem:[%s6] sm:$0x1]
    %v119 = vlaneseq
    %v120 = vshrl.u32 %v119, 7
    %v121 = vsub.s32 0, %v120
    %v122 = vrot.slane %v117, %v121
    %v124 = vld [vmem:[#allocation3] sm:$0xff]
    %v125 = vld [vmem:[#allocation3 + $0x8] sm:$0xff]
    %v126 = vpack.c.bf16 %v125, %v124
    %v127 = vld [vmem:[%s3] sm:$0x1]
    %v129 = vlaneseq
    %v130 = vshrl.u32 %v129, 7
    %v131 = vsub.s32 0, %v130
    %v132 = vrot.slane %v127, %v131
    %vm134 = vcmask 130048
    %v136 = vsel %vm134, %v126, 0
    %138 = vmatprep.subr.bf16.mxu0 0
    %139 = vmatpush1.bf16.msra.mxu0 0
    %140 = vmatprep.subr.bf16.mxu0 0
    %141 = vmatpush1.bf16.msra.mxu0 0
    %142 = vmatprep.subr.bf16.mxu0 0
    %143 = vmatpush1.bf16.msra.mxu0 0
    %144 = vmatprep.subr.bf16.mxu0 0
    %145 = vmatpush1.bf16.msra.mxu0 0
    %146 = vmatprep.subr.bf16.mxu0 0
    %147 = vmatpush1.bf16.msra.mxu0 0
    %148 = vmatprep.subr.bf16.mxu0 0
    %149 = vmatpush1.bf16.msra.mxu0 0
    %150 = vmatprep.subr.bf16.mxu0 0
    %151 = vmatpush1.bf16.msra.mxu0 0
    %152 = vmatprep.subr.bf16.mxu0 0
    %153 = vmatpush1.bf16.msra.mxu0 %v92
    %154 = vmatprep.subr.bf16.mxu0 0
    %155 = vmatpush2.bf16.msra.mxu0 0
    %156 = vmatprep.subr.bf16.mxu0 0
    %157 = vmatpush2.bf16.msra.mxu0 0
    %158 = vmatprep.subr.bf16.mxu0 0
    %159 = vmatpush2.bf16.msra.mxu0 0
    %160 = vmatprep.subr.bf16.mxu0 0
    %161 = vmatpush2.bf16.msra.mxu0 0
    %162 = vmatprep.subr.bf16.mxu0 0
    %163 = vmatpush2.bf16.msra.mxu0 0
    %164 = vmatprep.subr.bf16.mxu0 0
    %165 = vmatpush2.bf16.msra.mxu0 0
    %166 = vmatprep.subr.bf16.mxu0 0
    %167 = vmatpush2.bf16.msra.mxu0 0
    %168 = vmatprep.subr.bf16.mxu0 0
    %169 = vmatpush2.bf16.msra.mxu0 0
    %170 = vmatprep.mubr.bf16.mxu0 0
    %171 = vmatmul.mubr.bf16.gmra.mxu0 %v136
    %v172 = vpop.f32.mrf.mxu0
    %v173 = vadd.f32 %v132, %v172
    %v174 = vpop.f32.mrf.mxu0
    %v175 = vpop.f32.mrf.mxu0
    %v176 = vadd.f32 %v132, %v175
    %v177 = vpop.f32.mrf.mxu0
    %178 = vdwg.mxu0
    %v179 = vadd.f32 %v173, 0.0
    %v180 = vadd.f32 %v176, 0.0
    %v181 = vxor.u32 %v179, 2147483648
    %v182 = vxor.u32 %v180, 2147483648
    %v183 = vmul.f32 %v181, 1.442695
    %v184 = vpow.pop %v183
    %v185 = vmul.f32 %v182, 1.442695
    %v186 = vpow.pop %v185
    %v187 = vadd.f32 %v184, 1.0
    %v188 = vadd.f32 %v186, 1.0
    %v189 = vrcp.pop %v187
    %v190 = vmul.f32 1.0, %v189
    %v191 = vrcp.pop %v188
    %v192 = vmul.f32 1.0, %v191
    %v193 = vtanh.pop %v179
    %v194 = vtanh.pop %v180
    %v195 = vmul.f32 %v190, 0.0
    %v196 = vmul.f32 %v192, 0.0
    %199 = vrot.lane.b32.xlu0 %v193, 64
    %v200 = vpop.permute.xlu0 %199
    %201 = vrot.lane.b32.xlu0 %v194, 64
    %v202 = vpop.permute.xlu0 %201
    %v205 = vmul.f32 %v190, %v200
    %v206 = vmul.f32 %v192, %v202
    %209 = vrot.lane.b32.xlu0 %v205, 32
    %v210 = vpop.permute.xlu0 %209
    %211 = vrot.lane.b32.xlu0 %v206, 32
    %v212 = vpop.permute.xlu0 %211
    %v215 = vadd.f32 %v195, %v210
    %v216 = vadd.f32 %v196, %v212
    %v217 = vtanh.pop %v215
    %v218 = vtanh.pop %v216
    %221 = vrot.lane.b32.xlu0 %v217, 64
    %v222 = vpop.permute.xlu0 %221
    %223 = vrot.lane.b32.xlu0 %v218, 64
    %v224 = vpop.permute.xlu0 %223
    %v227 = vmul.f32 %v190, %v222
    %v228 = vmul.f32 %v192, %v224
    %v229 = vpack.c.bf16 %v227, %v227
    %v230 = vpack.c.bf16 %v228, %v228
    %v233 = vunpack.c.l.b16 %v229
    %v234 = vunpack.c.l.b16 %v230
    %v235 = vrot.slane %v234, 7
    %vm236 = vcmask 1041409
    %v237 = vsel %vm236, %v235, %v233
    %v238 = vpack.c.b16 %v237, %v237
    %239 = vrot.lane.b32.xlu0 %v238, 32
    %v240 = vpop.permute.xlu0 %239
    %vm241 = vcmask 261120
    %v243 = vsel %vm241, %v240, 0
    %245 = vmatprep.subr.bf16.mxu0 0
    %246 = vmatpush1.bf16.msra.mxu0 0
    %247 = vmatprep.subr.bf16.mxu0 0
    %248 = vmatpush1.bf16.msra.mxu0 0
    %249 = vmatprep.subr.bf16.mxu0 0
    %250 = vmatpush1.bf16.msra.mxu0 0
    %251 = vmatprep.subr.bf16.mxu0 0
    %252 = vmatpush1.bf16.msra.mxu0 0
    %253 = vmatprep.subr.bf16.mxu0 0
    %254 = vmatpush1.bf16.msra.mxu0 0
    %255 = vmatprep.subr.bf16.mxu0 0
    %256 = vmatpush1.bf16.msra.mxu0 0
    %257 = vmatprep.subr.bf16.mxu0 %v104
    %258 = vmatpush1.bf16.msra.mxu0 %v103
    %259 = vmatprep.subr.bf16.mxu0 %v102
    %260 = vmatpush1.bf16.msra.mxu0 %v101
    %261 = vmatprep.subr.bf16.mxu0 0
    %262 = vmatpush2.bf16.msra.mxu0 0
    %263 = vmatprep.subr.bf16.mxu0 0
    %264 = vmatpush2.bf16.msra.mxu0 0
    %265 = vmatprep.subr.bf16.mxu0 0
    %266 = vmatpush2.bf16.msra.mxu0 0
    %267 = vmatprep.subr.bf16.mxu0 0
    %268 = vmatpush2.bf16.msra.mxu0 0
    %269 = vmatprep.subr.bf16.mxu0 0
    %270 = vmatpush2.bf16.msra.mxu0 0
    %271 = vmatprep.subr.bf16.mxu0 0
    %272 = vmatpush2.bf16.msra.mxu0 0
    %273 = vmatprep.subr.bf16.mxu0 0
    %274 = vmatpush2.bf16.msra.mxu0 0
    %275 = vmatprep.subr.bf16.mxu0 0
    %276 = vmatpush2.bf16.msra.mxu0 0
    %277 = vmatprep.mubr.bf16.mxu0 0
    %278 = vmatmul.mubr.bf16.gmra.mxu0 %v243
    %v279 = vpop.f32.mrf.mxu0
    %v280 = vadd.f32 0.0, %v279
    %v281 = vpop.f32.mrf.mxu0
    %v282 = vadd.f32 0.0, %v281
    %v283 = vpop.f32.mrf.mxu0
    %v284 = vpop.f32.mrf.mxu0
    %285 = vdwg.mxu0
    %v286 = vadd.f32 %v282, %v122
    %v287 = vxor.u32 %v286, 2147483648
    %v288 = vmul.f32 %v287, 1.442695
    %v289 = vpow.pop %v288
    %v290 = vadd.f32 %v289, 1.0
    %v291 = vrcp.pop %v290
    %v292 = vmul.f32 1.0, %v291
    %v293 = vtanh.pop %v286
    %v294 = vmul.f32 %v292, 0.0
    %296 = vrot.lane.b32.xlu0 %v293, 64
    %v297 = vpop.permute.xlu0 %296
    %v299 = vmul.f32 %v292, %v297
    %301 = vrot.lane.b32.xlu0 %v299, 32
    %v302 = vpop.permute.xlu0 %301
    %v304 = vadd.f32 %v294, %v302
    %v305 = vtanh.pop %v304
    %307 = vrot.lane.b32.xlu0 %v305, 64
    %v308 = vpop.permute.xlu0 %307
    %v310 = vmul.f32 %v292, %v308
    %v311 = vpack.c.bf16 %v310, %v310
    %313 = vrot.lane.b32.xlu0 %v311, 32
    %v314 = vpop.permute.xlu0 %313
    %v316 = vsel %vm241, %v314, 0
    %318 = vmatprep.subr.bf16.mxu0 0
    %319 = vmatpush1.bf16.msra.mxu0 0
    %320 = vmatprep.subr.bf16.mxu0 0
    %321 = vmatpush1.bf16.msra.mxu0 0
    %322 = vmatprep.subr.bf16.mxu0 0
    %323 = vmatpush1.bf16.msra.mxu0 0
    %324 = vmatprep.subr.bf16.mxu0 0
    %325 = vmatpush1.bf16.msra.mxu0 0
    %326 = vmatprep.subr.bf16.mxu0 0
    %327 = vmatpush1.bf16.msra.mxu0 0
    %328 = vmatprep.subr.bf16.mxu0 0
    %329 = vmatpush1.bf16.msra.mxu0 0
    %330 = vmatprep.subr.bf16.mxu0 0
    %331 = vmatpush1.bf16.msra.mxu0 %v110
    %332 = vmatprep.subr.bf16.mxu0 0
    %333 = vmatpush1.bf16.msra.mxu0 %v109
    %334 = vmatprep.subr.bf16.mxu0 0
    %335 = vmatpush2.bf16.msra.mxu0 0
    %336 = vmatprep.subr.bf16.mxu0 0
    %337 = vmatpush2.bf16.msra.mxu0 0
    %338 = vmatprep.subr.bf16.mxu0 0
    %339 = vmatpush2.bf16.msra.mxu0 0
    %340 = vmatprep.subr.bf16.mxu0 0
    %341 = vmatpush2.bf16.msra.mxu0 0
    %342 = vmatprep.subr.bf16.mxu0 0
    %343 = vmatpush2.bf16.msra.mxu0 0
    %344 = vmatprep.subr.bf16.mxu0 0
    %345 = vmatpush2.bf16.msra.mxu0 0
    %346 = vmatprep.subr.bf16.mxu0 0
    %347 = vmatpush2.bf16.msra.mxu0 0
    %348 = vmatprep.subr.bf16.mxu0 0
    %349 = vmatpush2.bf16.msra.mxu0 0
    %350 = vmatprep.mubr.bf16.mxu0 0
    %351 = vmatmul.mubr.bf16.gmra.mxu0 %v316
    %v352 = vpop.f32.mrf.mxu0
    %v353 = vadd.f32 %v122, %v352
    %v354 = vpop.f32.mrf.mxu0
    %v355 = vpop.f32.mrf.mxu0
    %v356 = vpop.f32.mrf.mxu0
    %357 = vdwg.mxu0
    %v359 = vrot.slane %v280, 7
    %v362 = vadd.f32 %v173, %v359
    %v363 = vadd.f32 %v176, %v280
    %v364 = vxor.u32 %v362, 2147483648
    %v365 = vxor.u32 %v363, 2147483648
    %v366 = vmul.f32 %v364, 1.442695
    %v367 = vpow.pop %v366
    %v368 = vmul.f32 %v365, 1.442695
    %v369 = vpow.pop %v368
    %v370 = vadd.f32 %v367, 1.0
    %v371 = vadd.f32 %v369, 1.0
    %v372 = vrcp.pop %v370
    %v373 = vmul.f32 1.0, %v372
    %v374 = vrcp.pop %v371
    %v375 = vmul.f32 1.0, %v374
    %v376 = vtanh.pop %v362
    %v377 = vtanh.pop %v363
    %v380 = vrot.slane %v215, 7
    %v381 = vrot.slane %v216, 7
    %v384 = vmul.f32 %v373, %v380
    %v385 = vmul.f32 %v375, %v381
    %388 = vrot.lane.b32.xlu0 %v376, 64
    %v389 = vpop.permute.xlu0 %388
    %390 = vrot.lane.b32.xlu0 %v377, 64
    %v391 = vpop.permute.xlu0 %390
    %v394 = vmul.f32 %v373, %v389
    %v395 = vmul.f32 %v375, %v391
    %398 = vrot.lane.b32.xlu0 %v394, 32
    %v399 = vpop.permute.xlu0 %398
    %400 = vrot.lane.b32.xlu0 %v395, 32
    %v401 = vpop.permute.xlu0 %400
    %v404 = vadd.f32 %v384, %v399
    %v405 = vadd.f32 %v385, %v401
    %v406 = vtanh.pop %v404
    %v407 = vtanh.pop %v405
    %410 = vrot.lane.b32.xlu0 %v406, 64
    %v411 = vpop.permute.xlu0 %410
    %412 = vrot.lane.b32.xlu0 %v407, 64
    %v413 = vpop.permute.xlu0 %412
    %v416 = vmul.f32 %v373, %v411
    %v417 = vmul.f32 %v375, %v413
    %v418 = vpack.c.bf16 %v416, %v416
    %v419 = vpack.c.bf16 %v417, %v417
    %v422 = vunpack.c.l.b16 %v418
    %v423 = vunpack.c.l.b16 %v419
    %v424 = vrot.slane %v422, 1
    %v425 = vsel %vm236, %v423, %v424
    %v426 = vpack.c.b16 %v425, %v425
    %427 = vrot.lane.b32.xlu0 %v426, 32
    %v428 = vpop.permute.xlu0 %427
    %v430 = vsel %vm241, %v428, 0
    %432 = vmatprep.subr.bf16.mxu0 0
    %433 = vmatpush1.bf16.msra.mxu0 0
    %434 = vmatprep.subr.bf16.mxu0 0
    %435 = vmatpush1.bf16.msra.mxu0 0
    %436 = vmatprep.subr.bf16.mxu0 0
    %437 = vmatpush1.bf16.msra.mxu0 0
    %438 = vmatprep.subr.bf16.mxu0 0
    %439 = vmatpush1.bf16.msra.mxu0 0
    %440 = vmatprep.subr.bf16.mxu0 0
    %441 = vmatpush1.bf16.msra.mxu0 0
    %442 = vmatprep.subr.bf16.mxu0 0
    %443 = vmatpush1.bf16.msra.mxu0 0
    %444 = vmatprep.subr.bf16.mxu0 %v104
    %445 = vmatpush1.bf16.msra.mxu0 %v103
    %446 = vmatprep.subr.bf16.mxu0 %v102
    %447 = vmatpush1.bf16.msra.mxu0 %v101
    %448 = vmatprep.subr.bf16.mxu0 0
    %449 = vmatpush2.bf16.msra.mxu0 0
    %450 = vmatprep.subr.bf16.mxu0 0
    %451 = vmatpush2.bf16.msra.mxu0 0
    %452 = vmatprep.subr.bf16.mxu0 0
    %453 = vmatpush2.bf16.msra.mxu0 0
    %454 = vmatprep.subr.bf16.mxu0 0
    %455 = vmatpush2.bf16.msra.mxu0 0
    %456 = vmatprep.subr.bf16.mxu0 0
    %457 = vmatpush2.bf16.msra.mxu0 0
    %458 = vmatprep.subr.bf16.mxu0 0
    %459 = vmatpush2.bf16.msra.mxu0 0
    %460 = vmatprep.subr.bf16.mxu0 0
    %461 = vmatpush2.bf16.msra.mxu0 0
    %462 = vmatprep.subr.bf16.mxu0 0
    %463 = vmatpush2.bf16.msra.mxu0 0
    %464 = vmatprep.mubr.bf16.mxu0 0
    %465 = vmatmul.mubr.bf16.gmra.mxu0 %v430
    %v466 = vpop.f32.mrf.mxu0
    %v467 = vadd.f32 0.0, %v466
    %v468 = vpop.f32.mrf.mxu0
    %v469 = vadd.f32 0.0, %v468
    %v470 = vpop.f32.mrf.mxu0
    %v471 = vpop.f32.mrf.mxu0
    %472 = vdwg.mxu0
    %v473 = vadd.f32 %v469, %v353
    %v474 = vxor.u32 %v473, 2147483648
    %v475 = vmul.f32 %v474, 1.442695
    %v476 = vpow.pop %v475
    %v477 = vadd.f32 %v476, 1.0
    %v478 = vrcp.pop %v477
    %v479 = vmul.f32 1.0, %v478
    %v480 = vtanh.pop %v473
    %v481 = vmul.f32 %v479, %v304
    %483 = vrot.lane.b32.xlu0 %v480, 64
    %v484 = vpop.permute.xlu0 %483
    %v486 = vmul.f32 %v479, %v484
    %488 = vrot.lane.b32.xlu0 %v486, 32
    %v489 = vpop.permute.xlu0 %488
    %v491 = vadd.f32 %v481, %v489
    %v492 = vtanh.pop %v491
    %494 = vrot.lane.b32.xlu0 %v492, 64
    %v495 = vpop.permute.xlu0 %494
    %v497 = vmul.f32 %v479, %v495
    %v498 = vpack.c.bf16 %v497, %v497
    %500 = vrot.lane.b32.xlu0 %v498, 32
    %v501 = vpop.permute.xlu0 %500
    %v503 = vsel %vm241, %v501, 0
    %505 = vmatprep.subr.bf16.mxu0 0
    %506 = vmatpush1.bf16.msra.mxu0 0
    %507 = vmatprep.subr.bf16.mxu0 0
    %508 = vmatpush1.bf16.msra.mxu0 0
    %509 = vmatprep.subr.bf16.mxu0 0
    %510 = vmatpush1.bf16.msra.mxu0 0
    %511 = vmatprep.subr.bf16.mxu0 0
    %512 = vmatpush1.bf16.msra.mxu0 0
    %513 = vmatprep.subr.bf16.mxu0 0
    %514 = vmatpush1.bf16.msra.mxu0 0
    %515 = vmatprep.subr.bf16.mxu0 0
    %516 = vmatpush1.bf16.msra.mxu0 0
    %517 = vmatprep.subr.bf16.mxu0 0
    %518 = vmatpush1.bf16.msra.mxu0 %v110
    %519 = vmatprep.subr.bf16.mxu0 0
    %520 = vmatpush1.bf16.msra.mxu0 %v109
    %521 = vmatprep.subr.bf16.mxu0 0
    %522 = vmatpush2.bf16.msra.mxu0 0
    %523 = vmatprep.subr.bf16.mxu0 0
    %524 = vmatpush2.bf16.msra.mxu0 0
    %525 = vmatprep.subr.bf16.mxu0 0
    %526 = vmatpush2.bf16.msra.mxu0 0
    %527 = vmatprep.subr.bf16.mxu0 0
    %528 = vmatpush2.bf16.msra.mxu0 0
    %529 = vmatprep.subr.bf16.mxu0 0
    %530 = vmatpush2.bf16.msra.mxu0 0
    %531 = vmatprep.subr.bf16.mxu0 0
    %532 = vmatpush2.bf16.msra.mxu0 0
    %533 = vmatprep.subr.bf16.mxu0 0
    %534 = vmatpush2.bf16.msra.mxu0 0
    %535 = vmatprep.subr.bf16.mxu0 0
    %536 = vmatpush2.bf16.msra.mxu0 0
    %537 = vmatprep.mubr.bf16.mxu0 0
    %538 = vmatmul.mubr.bf16.gmra.mxu0 %v503
    %v539 = vpop.f32.mrf.mxu0
    %v540 = vadd.f32 %v122, %v539
    %v541 = vpop.f32.mrf.mxu0
    %v542 = vpop.f32.mrf.mxu0
    %v543 = vpop.f32.mrf.mxu0
    %544 = vdwg.mxu0
    %v546 = vrot.slane %v467, 6
    %v547 = vrot.slane %v467, 7
    %v550 = vadd.f32 %v173, %v546
    %v551 = vadd.f32 %v176, %v547
    %v552 = vxor.u32 %v550, 2147483648
    %v553 = vxor.u32 %v551, 2147483648
    %v554 = vmul.f32 %v552, 1.442695
    %v555 = vpow.pop %v554
    %v556 = vmul.f32 %v553, 1.442695
    %v557 = vpow.pop %v556
    %v558 = vadd.f32 %v555, 1.0
    %v559 = vadd.f32 %v557, 1.0
    %v560 = vrcp.pop %v558
    %v561 = vmul.f32 1.0, %v560
    %v562 = vrcp.pop %v559
    %v563 = vmul.f32 1.0, %v562
    %v564 = vtanh.pop %v550
    %v565 = vtanh.pop %v551
    %v568 = vrot.slane %v404, 7
    %v569 = vrot.slane %v405, 7
    %v572 = vmul.f32 %v561, %v568
    %v573 = vmul.f32 %v563, %v569
    %576 = vrot.lane.b32.xlu0 %v564, 64
    %v577 = vpop.permute.xlu0 %576
    %578 = vrot.lane.b32.xlu0 %v565, 64
    %v579 = vpop.permute.xlu0 %578
    %v582 = vmul.f32 %v561, %v577
    %v583 = vmul.f32 %v563, %v579
    %586 = vrot.lane.b32.xlu0 %v582, 32
    %v587 = vpop.permute.xlu0 %586
    %588 = vrot.lane.b32.xlu0 %v583, 32
    %v589 = vpop.permute.xlu0 %588
    %v592 = vadd.f32 %v572, %v587
    %v593 = vadd.f32 %v573, %v589
    %v594 = vtanh.pop %v592
    %v595 = vtanh.pop %v593
    %598 = vrot.lane.b32.xlu0 %v594, 64
    %v599 = vpop.permute.xlu0 %598
    %600 = vrot.lane.b32.xlu0 %v595, 64
    %v601 = vpop.permute.xlu0 %600
    %v604 = vmul.f32 %v561, %v599
    %v605 = vmul.f32 %v563, %v601
    %v606 = vpack.c.bf16 %v604, %v604
    %v607 = vpack.c.bf16 %v605, %v605
    %v610 = vunpack.c.l.b16 %v606
    %v611 = vunpack.c.l.b16 %v607
    %v612 = vrot.slane %v610, 2
    %v613 = vrot.slane %v611, 1
    %v614 = vsel %vm236, %v613, %v612
    %v615 = vpack.c.b16 %v614, %v614
    %616 = vrot.lane.b32.xlu0 %v615, 32
    %v617 = vpop.permute.xlu0 %616
    %v619 = vsel %vm241, %v617, 0
    %621 = vmatprep.subr.bf16.mxu0 0
    %622 = vmatpush1.bf16.msra.mxu0 0
    %623 = vmatprep.subr.bf16.mxu0 0
    %624 = vmatpush1.bf16.msra.mxu0 0
    %625 = vmatprep.subr.bf16.mxu0 0
    %626 = vmatpush1.bf16.msra.mxu0 0
    %627 = vmatprep.subr.bf16.mxu0 0
    %628 = vmatpush1.bf16.msra.mxu0 0
    %629 = vmatprep.subr.bf16.mxu0 0
    %630 = vmatpush1.bf16.msra.mxu0 0
    %631 = vmatprep.subr.bf16.mxu0 0
    %632 = vmatpush1.bf16.msra.mxu0 0
    %633 = vmatprep.subr.bf16.mxu0 %v104
    %634 = vmatpush1.bf16.msra.mxu0 %v103
    %635 = vmatprep.subr.bf16.mxu0 %v102
    %636 = vmatpush1.bf16.msra.mxu0 %v101
    %637 = vmatprep.subr.bf16.mxu0 0
    %638 = vmatpush2.bf16.msra.mxu0 0
    %639 = vmatprep.subr.bf16.mxu0 0
    %640 = vmatpush2.bf16.msra.mxu0 0
    %641 = vmatprep.subr.bf16.mxu0 0
    %642 = vmatpush2.bf16.msra.mxu0 0
    %643 = vmatprep.subr.bf16.mxu0 0
    %644 = vmatpush2.bf16.msra.mxu0 0
    %645 = vmatprep.subr.bf16.mxu0 0
    %646 = vmatpush2.bf16.msra.mxu0 0
    %647 = vmatprep.subr.bf16.mxu0 0
    %648 = vmatpush2.bf16.msra.mxu0 0
    %649 = vmatprep.subr.bf16.mxu0 0
    %650 = vmatpush2.bf16.msra.mxu0 0
    %651 = vmatprep.subr.bf16.mxu0 0
    %652 = vmatpush2.bf16.msra.mxu0 0
    %653 = vmatprep.mubr.bf16.mxu0 0
    %654 = vmatmul.mubr.bf16.gmra.mxu0 %v619
    %v655 = vpop.f32.mrf.mxu0
    %v656 = vadd.f32 0.0, %v655
    %v657 = vpop.f32.mrf.mxu0
    %v658 = vadd.f32 0.0, %v657
    %v659 = vpop.f32.mrf.mxu0
    %v660 = vpop.f32.mrf.mxu0
    %661 = vdwg.mxu0
    %v662 = vadd.f32 %v658, %v540
    %v663 = vxor.u32 %v662, 2147483648
    %v664 = vmul.f32 %v663, 1.442695
    %v665 = vpow.pop %v664
    %v666 = vadd.f32 %v665, 1.0
    %v667 = vrcp.pop %v666
    %v668 = vmul.f32 1.0, %v667
    %v669 = vtanh.pop %v662
    %v670 = vmul.f32 %v668, %v491
    %672 = vrot.lane.b32.xlu0 %v669, 64
    %v673 = vpop.permute.xlu0 %672
    %v675 = vmul.f32 %v668, %v673
    %677 = vrot.lane.b32.xlu0 %v675, 32
    %v678 = vpop.permute.xlu0 %677
    %v680 = vadd.f32 %v670, %v678
    %v681 = vtanh.pop %v680
    %683 = vrot.lane.b32.xlu0 %v681, 64
    %v684 = vpop.permute.xlu0 %683
    %v686 = vmul.f32 %v668, %v684
    %v687 = vpack.c.bf16 %v686, %v686
    %689 = vrot.lane.b32.xlu0 %v687, 32
    %v690 = vpop.permute.xlu0 %689
    %v692 = vsel %vm241, %v690, 0
    %694 = vmatprep.subr.bf16.mxu0 0
    %695 = vmatpush1.bf16.msra.mxu0 0
    %696 = vmatprep.subr.bf16.mxu0 0
    %697 = vmatpush1.bf16.msra.mxu0 0
    %698 = vmatprep.subr.bf16.mxu0 0
    %699 = vmatpush1.bf16.msra.mxu0 0
    %700 = vmatprep.subr.bf16.mxu0 0
    %701 = vmatpush1.bf16.msra.mxu0 0
    %702 = vmatprep.subr.bf16.mxu0 0
    %703 = vmatpush1.bf16.msra.mxu0 0
    %704 = vmatprep.subr.bf16.mxu0 0
    %705 = vmatpush1.bf16.msra.mxu0 0
    %706 = vmatprep.subr.bf16.mxu0 0
    %707 = vmatpush1.bf16.msra.mxu0 %v110
    %708 = vmatprep.subr.bf16.mxu0 0
    %709 = vmatpush1.bf16.msra.mxu0 %v109
    %710 = vmatprep.subr.bf16.mxu0 0
    %711 = vmatpush2.bf16.msra.mxu0 0
    %712 = vmatprep.subr.bf16.mxu0 0
    %713 = vmatpush2.bf16.msra.mxu0 0
    %714 = vmatprep.subr.bf16.mxu0 0
    %715 = vmatpush2.bf16.msra.mxu0 0
    %716 = vmatprep.subr.bf16.mxu0 0
    %717 = vmatpush2.bf16.msra.mxu0 0
    %718 = vmatprep.subr.bf16.mxu0 0
    %719 = vmatpush2.bf16.msra.mxu0 0
    %720 = vmatprep.subr.bf16.mxu0 0
    %721 = vmatpush2.bf16.msra.mxu0 0
    %722 = vmatprep.subr.bf16.mxu0 0
    %723 = vmatpush2.bf16.msra.mxu0 0
    %724 = vmatprep.subr.bf16.mxu0 0
    %725 = vmatpush2.bf16.msra.mxu0 0
    %726 = vmatprep.mubr.bf16.mxu0 0
    %727 = vmatmul.mubr.bf16.gmra.mxu0 %v692
    %v728 = vpop.f32.mrf.mxu0
    %v729 = vadd.f32 %v122, %v728
    %v730 = vpop.f32.mrf.mxu0
    %v731 = vpop.f32.mrf.mxu0
    %v732 = vpop.f32.mrf.mxu0
    %733 = vdwg.mxu0
    %v735 = vrot.slane %v656, 5
    %v736 = vrot.slane %v656, 6
    %v739 = vadd.f32 %v173, %v735
    %v740 = vadd.f32 %v176, %v736
    %v741 = vxor.u32 %v739, 2147483648
    %v742 = vxor.u32 %v740, 2147483648
    %v743 = vmul.f32 %v741, 1.442695
    %v744 = vpow.pop %v743
    %v745 = vmul.f32 %v742, 1.442695
    %v746 = vpow.pop %v745
    %v747 = vadd.f32 %v744, 1.0
    %v748 = vadd.f32 %v746, 1.0
    %v749 = vrcp.pop %v747
    %v750 = vmul.f32 1.0, %v749
    %v751 = vrcp.pop %v748
    %v752 = vmul.f32 1.0, %v751
    %v753 = vtanh.pop %v739
    %v754 = vtanh.pop %v740
    %v757 = vrot.slane %v592, 7
    %v758 = vrot.slane %v593, 7
    %v761 = vmul.f32 %v750, %v757
    %v762 = vmul.f32 %v752, %v758
    %765 = vrot.lane.b32.xlu0 %v753, 64
    %v766 = vpop.permute.xlu0 %765
    %767 = vrot.lane.b32.xlu0 %v754, 64
    %v768 = vpop.permute.xlu0 %767
    %v771 = vmul.f32 %v750, %v766
    %v772 = vmul.f32 %v752, %v768
    %775 = vrot.lane.b32.xlu0 %v771, 32
    %v776 = vpop.permute.xlu0 %775
    %777 = vrot.lane.b32.xlu0 %v772, 32
    %v778 = vpop.permute.xlu0 %777
    %v781 = vadd.f32 %v761, %v776
    %v782 = vadd.f32 %v762, %v778
    %v783 = vtanh.pop %v781
    %v784 = vtanh.pop %v782
    %787 = vrot.lane.b32.xlu0 %v783, 64
    %v788 = vpop.permute.xlu0 %787
    %789 = vrot.lane.b32.xlu0 %v784, 64
    %v790 = vpop.permute.xlu0 %789
    %v793 = vmul.f32 %v750, %v788
    %v794 = vmul.f32 %v752, %v790
    %v795 = vpack.c.bf16 %v793, %v793
    %v796 = vpack.c.bf16 %v794, %v794
    %v799 = vunpack.c.l.b16 %v795
    %v800 = vunpack.c.l.b16 %v796
    %v801 = vrot.slane %v799, 3
    %v802 = vrot.slane %v800, 2
    %v803 = vsel %vm236, %v802, %v801
    %v804 = vpack.c.b16 %v803, %v803
    %805 = vrot.lane.b32.xlu0 %v804, 32
    %v806 = vpop.permute.xlu0 %805
    %v808 = vsel %vm241, %v806, 0
    %810 = vmatprep.subr.bf16.mxu0 0
    %811 = vmatpush1.bf16.msra.mxu0 0
    %812 = vmatprep.subr.bf16.mxu0 0
    %813 = vmatpush1.bf16.msra.mxu0 0
    %814 = vmatprep.subr.bf16.mxu0 0
    %815 = vmatpush1.bf16.msra.mxu0 0
    %816 = vmatprep.subr.bf16.mxu0 0
    %817 = vmatpush1.bf16.msra.mxu0 0
    %818 = vmatprep.subr.bf16.mxu0 0
    %819 = vmatpush1.bf16.msra.mxu0 0
    %820 = vmatprep.subr.bf16.mxu0 0
    %821 = vmatpush1.bf16.msra.mxu0 0
    %822 = vmatprep.subr.bf16.mxu0 %v104
    %823 = vmatpush1.bf16.msra.mxu0 %v103
    %824 = vmatprep.subr.bf16.mxu0 %v102
    %825 = vmatpush1.bf16.msra.mxu0 %v101
    %826 = vmatprep.subr.bf16.mxu0 0
    %827 = vmatpush2.bf16.msra.mxu0 0
    %828 = vmatprep.subr.bf16.mxu0 0
    %829 = vmatpush2.bf16.msra.mxu0 0
    %830 = vmatprep.subr.bf16.mxu0 0
    %831 = vmatpush2.bf16.msra.mxu0 0
    %832 = vmatprep.subr.bf16.mxu0 0
    %833 = vmatpush2.bf16.msra.mxu0 0
    %834 = vmatprep.subr.bf16.mxu0 0
    %835 = vmatpush2.bf16.msra.mxu0 0
    %836 = vmatprep.subr.bf16.mxu0 0
    %837 = vmatpush2.bf16.msra.mxu0 0
    %838 = vmatprep.subr.bf16.mxu0 0
    %839 = vmatpush2.bf16.msra.mxu0 0
    %840 = vmatprep.subr.bf16.mxu0 0
    %841 = vmatpush2.bf16.msra.mxu0 0
    %842 = vmatprep.mubr.bf16.mxu0 0
    %843 = vmatmul.mubr.bf16.gmra.mxu0 %v808
    %v844 = vpop.f32.mrf.mxu0
    %v845 = vadd.f32 0.0, %v844
    %v846 = vpop.f32.mrf.mxu0
    %v847 = vadd.f32 0.0, %v846
    %v848 = vpop.f32.mrf.mxu0
    %v849 = vpop.f32.mrf.mxu0
    %850 = vdwg.mxu0
    %v851 = vadd.f32 %v847, %v729
    %v852 = vxor.u32 %v851, 2147483648
    %v853 = vmul.f32 %v852, 1.442695
    %v854 = vpow.pop %v853
    %v855 = vadd.f32 %v854, 1.0
    %v856 = vrcp.pop %v855
    %v857 = vmul.f32 1.0, %v856
    %v858 = vtanh.pop %v851
    %v859 = vmul.f32 %v857, %v680
    %861 = vrot.lane.b32.xlu0 %v858, 64
    %v862 = vpop.permute.xlu0 %861
    %v864 = vmul.f32 %v857, %v862
    %866 = vrot.lane.b32.xlu0 %v864, 32
    %v867 = vpop.permute.xlu0 %866
    %v869 = vadd.f32 %v859, %v867
    %v870 = vtanh.pop %v869
    %872 = vrot.lane.b32.xlu0 %v870, 64
    %v873 = vpop.permute.xlu0 %872
    %v875 = vmul.f32 %v857, %v873
    %v876 = vpack.c.bf16 %v875, %v875
    %878 = vrot.lane.b32.xlu0 %v876, 32
    %v879 = vpop.permute.xlu0 %878
    %v881 = vsel %vm241, %v879, 0
    %883 = vmatprep.subr.bf16.mxu0 0
    %884 = vmatpush1.bf16.msra.mxu0 0
    %885 = vmatprep.subr.bf16.mxu0 0
    %886 = vmatpush1.bf16.msra.mxu0 0
    %887 = vmatprep.subr.bf16.mxu0 0
    %888 = vmatpush1.bf16.msra.mxu0 0
    %889 = vmatprep.subr.bf16.mxu0 0
    %890 = vmatpush1.bf16.msra.mxu0 0
    %891 = vmatprep.subr.bf16.mxu0 0
    %892 = vmatpush1.bf16.msra.mxu0 0
    %893 = vmatprep.subr.bf16.mxu0 0
    %894 = vmatpush1.bf16.msra.mxu0 0
    %895 = vmatprep.subr.bf16.mxu0 0
    %896 = vmatpush1.bf16.msra.mxu0 %v110
    %897 = vmatprep.subr.bf16.mxu0 0
    %898 = vmatpush1.bf16.msra.mxu0 %v109
    %899 = vmatprep.subr.bf16.mxu0 0
    %900 = vmatpush2.bf16.msra.mxu0 0
    %901 = vmatprep.subr.bf16.mxu0 0
    %902 = vmatpush2.bf16.msra.mxu0 0
    %903 = vmatprep.subr.bf16.mxu0 0
    %904 = vmatpush2.bf16.msra.mxu0 0
    %905 = vmatprep.subr.bf16.mxu0 0
    %906 = vmatpush2.bf16.msra.mxu0 0
    %907 = vmatprep.subr.bf16.mxu0 0
    %908 = vmatpush2.bf16.msra.mxu0 0
    %909 = vmatprep.subr.bf16.mxu0 0
    %910 = vmatpush2.bf16.msra.mxu0 0
    %911 = vmatprep.subr.bf16.mxu0 0
    %912 = vmatpush2.bf16.msra.mxu0 0
    %913 = vmatprep.subr.bf16.mxu0 0
    %914 = vmatpush2.bf16.msra.mxu0 0
    %915 = vmatprep.mubr.bf16.mxu0 0
    %916 = vmatmul.mubr.bf16.gmra.mxu0 %v881
    %v917 = vpop.f32.mrf.mxu0
    %v918 = vadd.f32 %v122, %v917
    %v919 = vpop.f32.mrf.mxu0
    %v920 = vpop.f32.mrf.mxu0
    %v921 = vpop.f32.mrf.mxu0
    %922 = vdwg.mxu0
    %v924 = vrot.slane %v845, 4
    %v925 = vrot.slane %v845, 5
    %v928 = vadd.f32 %v173, %v924
    %v929 = vadd.f32 %v176, %v925
    %v930 = vxor.u32 %v928, 2147483648
    %v931 = vxor.u32 %v929, 2147483648
    %v932 = vmul.f32 %v930, 1.442695
    %v933 = vpow.pop %v932
    %v934 = vmul.f32 %v931, 1.442695
    %v935 = vpow.pop %v934
    %v936 = vadd.f32 %v933, 1.0
    %v937 = vadd.f32 %v935, 1.0
    %v938 = vrcp.pop %v936
    %v939 = vmul.f32 1.0, %v938
    %v940 = vrcp.pop %v937
    %v941 = vmul.f32 1.0, %v940
    %v942 = vtanh.pop %v928
    %v943 = vtanh.pop %v929
    %v946 = vrot.slane %v781, 7
    %v947 = vrot.slane %v782, 7
    %v950 = vmul.f32 %v939, %v946
    %v951 = vmul.f32 %v941, %v947
    %954 = vrot.lane.b32.xlu0 %v942, 64
    %v955 = vpop.permute.xlu0 %954
    %956 = vrot.lane.b32.xlu0 %v943, 64
    %v957 = vpop.permute.xlu0 %956
    %v960 = vmul.f32 %v939, %v955
    %v961 = vmul.f32 %v941, %v957
    %964 = vrot.lane.b32.xlu0 %v960, 32
    %v965 = vpop.permute.xlu0 %964
    %966 = vrot.lane.b32.xlu0 %v961, 32
    %v967 = vpop.permute.xlu0 %966
    %v970 = vadd.f32 %v950, %v965
    %v971 = vadd.f32 %v951, %v967
    %v972 = vtanh.pop %v970
    %v973 = vtanh.pop %v971
    %976 = vrot.lane.b32.xlu0 %v972, 64
    %v977 = vpop.permute.xlu0 %976
    %978 = vrot.lane.b32.xlu0 %v973, 64
    %v979 = vpop.permute.xlu0 %978
    %v982 = vmul.f32 %v939, %v977
    %v983 = vmul.f32 %v941, %v979
    %v984 = vpack.c.bf16 %v982, %v982
    %v985 = vpack.c.bf16 %v983, %v983
    %v988 = vunpack.c.l.b16 %v984
    %v989 = vunpack.c.l.b16 %v985
    %v990 = vrot.slane %v988, 4
    %v991 = vrot.slane %v989, 3
    %v992 = vsel %vm236, %v991, %v990
    %v993 = vpack.c.b16 %v992, %v992
    %994 = vrot.lane.b32.xlu0 %v993, 32
    %v995 = vpop.permute.xlu0 %994
    %v997 = vsel %vm241, %v995, 0
    %999 = vmatprep.subr.bf16.mxu0 0
    %1000 = vmatpush1.bf16.msra.mxu0 0
    %1001 = vmatprep.subr.bf16.mxu0 0
    %1002 = vmatpush1.bf16.msra.mxu0 0
    %1003 = vmatprep.subr.bf16.mxu0 0
    %1004 = vmatpush1.bf16.msra.mxu0 0
    %1005 = vmatprep.subr.bf16.mxu0 0
    %1006 = vmatpush1.bf16.msra.mxu0 0
    %1007 = vmatprep.subr.bf16.mxu0 0
    %1008 = vmatpush1.bf16.msra.mxu0 0
    %1009 = vmatprep.subr.bf16.mxu0 0
    %1010 = vmatpush1.bf16.msra.mxu0 0
    %1011 = vmatprep.subr.bf16.mxu0 %v104
    %1012 = vmatpush1.bf16.msra.mxu0 %v103
    %1013 = vmatprep.subr.bf16.mxu0 %v102
    %1014 = vmatpush1.bf16.msra.mxu0 %v101
    %1015 = vmatprep.subr.bf16.mxu0 0
    %1016 = vmatpush2.bf16.msra.mxu0 0
    %1017 = vmatprep.subr.bf16.mxu0 0
    %1018 = vmatpush2.bf16.msra.mxu0 0
    %1019 = vmatprep.subr.bf16.mxu0 0
    %1020 = vmatpush2.bf16.msra.mxu0 0
    %1021 = vmatprep.subr.bf16.mxu0 0
    %1022 = vmatpush2.bf16.msra.mxu0 0
    %1023 = vmatprep.subr.bf16.mxu0 0
    %1024 = vmatpush2.bf16.msra.mxu0 0
    %1025 = vmatprep.subr.bf16.mxu0 0
    %1026 = vmatpush2.bf16.msra.mxu0 0
    %1027 = vmatprep.subr.bf16.mxu0 0
    %1028 = vmatpush2.bf16.msra.mxu0 0
    %1029 = vmatprep.subr.bf16.mxu0 0
    %1030 = vmatpush2.bf16.msra.mxu0 0
    %1031 = vmatprep.mubr.bf16.mxu0 0
    %1032 = vmatmul.mubr.bf16.gmra.mxu0 %v997
    %v1033 = vpop.f32.mrf.mxu0
    %v1034 = vadd.f32 0.0, %v1033
    %v1035 = vpop.f32.mrf.mxu0
    %v1036 = vadd.f32 0.0, %v1035
    %v1037 = vpop.f32.mrf.mxu0
    %v1038 = vpop.f32.mrf.mxu0
    %1039 = vdwg.mxu0
    %v1040 = vadd.f32 %v1036, %v918
    %v1041 = vxor.u32 %v1040, 2147483648
    %v1042 = vmul.f32 %v1041, 1.442695
    %v1043 = vpow.pop %v1042
    %v1044 = vadd.f32 %v1043, 1.0
    %v1045 = vrcp.pop %v1044
    %v1046 = vmul.f32 1.0, %v1045
    %v1047 = vtanh.pop %v1040
    %v1048 = vmul.f32 %v1046, %v869
    %1050 = vrot.lane.b32.xlu0 %v1047, 64
    %v1051 = vpop.permute.xlu0 %1050
    %v1053 = vmul.f32 %v1046, %v1051
    %1055 = vrot.lane.b32.xlu0 %v1053, 32
    %v1056 = vpop.permute.xlu0 %1055
    %v1058 = vadd.f32 %v1048, %v1056
    %v1059 = vtanh.pop %v1058
    %1061 = vrot.lane.b32.xlu0 %v1059, 64
    %v1062 = vpop.permute.xlu0 %1061
    %v1064 = vmul.f32 %v1046, %v1062
    %v1065 = vpack.c.bf16 %v1064, %v1064
    %1067 = vrot.lane.b32.xlu0 %v1065, 32
    %v1068 = vpop.permute.xlu0 %1067
    %v1070 = vsel %vm241, %v1068, 0
    %1072 = vmatprep.subr.bf16.mxu0 0
    %1073 = vmatpush1.bf16.msra.mxu0 0
    %1074 = vmatprep.subr.bf16.mxu0 0
    %1075 = vmatpush1.bf16.msra.mxu0 0
    %1076 = vmatprep.subr.bf16.mxu0 0
    %1077 = vmatpush1.bf16.msra.mxu0 0
    %1078 = vmatprep.subr.bf16.mxu0 0
    %1079 = vmatpush1.bf16.msra.mxu0 0
    %1080 = vmatprep.subr.bf16.mxu0 0
    %1081 = vmatpush1.bf16.msra.mxu0 0
    %1082 = vmatprep.subr.bf16.mxu0 0
    %1083 = vmatpush1.bf16.msra.mxu0 0
    %1084 = vmatprep.subr.bf16.mxu0 0
    %1085 = vmatpush1.bf16.msra.mxu0 %v110
    %1086 = vmatprep.subr.bf16.mxu0 0
    %1087 = vmatpush1.bf16.msra.mxu0 %v109
    %1088 = vmatprep.subr.bf16.mxu0 0
    %1089 = vmatpush2.bf16.msra.mxu0 0
    %1090 = vmatprep.subr.bf16.mxu0 0
    %1091 = vmatpush2.bf16.msra.mxu0 0
    %1092 = vmatprep.subr.bf16.mxu0 0
    %1093 = vmatpush2.bf16.msra.mxu0 0
    %1094 = vmatprep.subr.bf16.mxu0 0
    %1095 = vmatpush2.bf16.msra.mxu0 0
    %1096 = vmatprep.subr.bf16.mxu0 0
    %1097 = vmatpush2.bf16.msra.mxu0 0
    %1098 = vmatprep.subr.bf16.mxu0 0
    %1099 = vmatpush2.bf16.msra.mxu0 0
    %1100 = vmatprep.subr.bf16.mxu0 0
    %1101 = vmatpush2.bf16.msra.mxu0 0
    %1102 = vmatprep.subr.bf16.mxu0 0
    %1103 = vmatpush2.bf16.msra.mxu0 0
    %1104 = vmatprep.mubr.bf16.mxu0 0
    %1105 = vmatmul.mubr.bf16.gmra.mxu0 %v1070
    %v1106 = vpop.f32.mrf.mxu0
    %v1107 = vadd.f32 %v122, %v1106
    %v1108 = vpop.f32.mrf.mxu0
    %v1109 = vpop.f32.mrf.mxu0
    %v1110 = vpop.f32.mrf.mxu0
    %1111 = vdwg.mxu0
    %v1113 = vrot.slane %v1034, 3
    %v1114 = vrot.slane %v1034, 4
    %v1117 = vadd.f32 %v173, %v1113
    %v1118 = vadd.f32 %v176, %v1114
    %v1119 = vxor.u32 %v1117, 2147483648
    %v1120 = vxor.u32 %v1118, 2147483648
    %v1121 = vmul.f32 %v1119, 1.442695
    %v1122 = vpow.pop %v1121
    %v1123 = vmul.f32 %v1120, 1.442695
    %v1124 = vpow.pop %v1123
    %v1125 = vadd.f32 %v1122, 1.0
    %v1126 = vadd.f32 %v1124, 1.0
    %v1127 = vrcp.pop %v1125
    %v1128 = vmul.f32 1.0, %v1127
    %v1129 = vrcp.pop %v1126
    %v1130 = vmul.f32 1.0, %v1129
    %v1131 = vtanh.pop %v1117
    %v1132 = vtanh.pop %v1118
    %v1135 = vrot.slane %v970, 7
    %v1136 = vrot.slane %v971, 7
    %v1139 = vmul.f32 %v1128, %v1135
    %v1140 = vmul.f32 %v1130, %v1136
    %1143 = vrot.lane.b32.xlu0 %v1131, 64
    %v1144 = vpop.permute.xlu0 %1143
    %1145 = vrot.lane.b32.xlu0 %v1132, 64
    %v1146 = vpop.permute.xlu0 %1145
    %v1149 = vmul.f32 %v1128, %v1144
    %v1150 = vmul.f32 %v1130, %v1146
    %1153 = vrot.lane.b32.xlu0 %v1149, 32
    %v1154 = vpop.permute.xlu0 %1153
    %1155 = vrot.lane.b32.xlu0 %v1150, 32
    %v1156 = vpop.permute.xlu0 %1155
    %v1159 = vadd.f32 %v1139, %v1154
    %v1160 = vadd.f32 %v1140, %v1156
    %v1161 = vtanh.pop %v1159
    %v1162 = vtanh.pop %v1160
    %1165 = vrot.lane.b32.xlu0 %v1161, 64
    %v1166 = vpop.permute.xlu0 %1165
    %1167 = vrot.lane.b32.xlu0 %v1162, 64
    %v1168 = vpop.permute.xlu0 %1167
    %v1171 = vmul.f32 %v1128, %v1166
    %v1172 = vmul.f32 %v1130, %v1168
    %v1173 = vpack.c.bf16 %v1171, %v1171
    %v1174 = vpack.c.bf16 %v1172, %v1172
    %v1177 = vunpack.c.l.b16 %v1173
    %v1178 = vunpack.c.l.b16 %v1174
    %v1179 = vrot.slane %v1177, 5
    %v1180 = vrot.slane %v1178, 4
    %v1181 = vsel %vm236, %v1180, %v1179
    %v1182 = vpack.c.b16 %v1181, %v1181
    %1183 = vrot.lane.b32.xlu0 %v1182, 32
    %v1184 = vpop.permute.xlu0 %1183
    %v1186 = vsel %vm241, %v1184, 0
    %1188 = vmatprep.subr.bf16.mxu0 0
    %1189 = vmatpush1.bf16.msra.mxu0 0
    %1190 = vmatprep.subr.bf16.mxu0 0
    %1191 = vmatpush1.bf16.msra.mxu0 0
    %1192 = vmatprep.subr.bf16.mxu0 0
    %1193 = vmatpush1.bf16.msra.mxu0 0
    %1194 = vmatprep.subr.bf16.mxu0 0
    %1195 = vmatpush1.bf16.msra.mxu0 0
    %1196 = vmatprep.subr.bf16.mxu0 0
    %1197 = vmatpush1.bf16.msra.mxu0 0
    %1198 = vmatprep.subr.bf16.mxu0 0
    %1199 = vmatpush1.bf16.msra.mxu0 0
    %1200 = vmatprep.subr.bf16.mxu0 %v104
    %1201 = vmatpush1.bf16.msra.mxu0 %v103
    %1202 = vmatprep.subr.bf16.mxu0 %v102
    %1203 = vmatpush1.bf16.msra.mxu0 %v101
    %1204 = vmatprep.subr.bf16.mxu0 0
    %1205 = vmatpush2.bf16.msra.mxu0 0
    %1206 = vmatprep.subr.bf16.mxu0 0
    %1207 = vmatpush2.bf16.msra.mxu0 0
    %1208 = vmatprep.subr.bf16.mxu0 0
    %1209 = vmatpush2.bf16.msra.mxu0 0
    %1210 = vmatprep.subr.bf16.mxu0 0
    %1211 = vmatpush2.bf16.msra.mxu0 0
    %1212 = vmatprep.subr.bf16.mxu0 0
    %1213 = vmatpush2.bf16.msra.mxu0 0
    %1214 = vmatprep.subr.bf16.mxu0 0
    %1215 = vmatpush2.bf16.msra.mxu0 0
    %1216 = vmatprep.subr.bf16.mxu0 0
    %1217 = vmatpush2.bf16.msra.mxu0 0
    %1218 = vmatprep.subr.bf16.mxu0 0
    %1219 = vmatpush2.bf16.msra.mxu0 0
    %1220 = vmatprep.mubr.bf16.mxu0 0
    %1221 = vmatmul.mubr.bf16.gmra.mxu0 %v1186
    %v1222 = vpop.f32.mrf.mxu0
    %v1223 = vadd.f32 0.0, %v1222
    %v1224 = vpop.f32.mrf.mxu0
    %v1225 = vadd.f32 0.0, %v1224
    %v1226 = vpop.f32.mrf.mxu0
    %v1227 = vpop.f32.mrf.mxu0
    %1228 = vdwg.mxu0
    %v1229 = vadd.f32 %v1225, %v1107
    %v1230 = vxor.u32 %v1229, 2147483648
    %v1231 = vmul.f32 %v1230, 1.442695
    %v1232 = vpow.pop %v1231
    %v1233 = vadd.f32 %v1232, 1.0
    %v1234 = vrcp.pop %v1233
    %v1235 = vmul.f32 1.0, %v1234
    %v1236 = vtanh.pop %v1229
    %v1237 = vmul.f32 %v1235, %v1058
    %1239 = vrot.lane.b32.xlu0 %v1236, 64
    %v1240 = vpop.permute.xlu0 %1239
    %v1242 = vmul.f32 %v1235, %v1240
    %1244 = vrot.lane.b32.xlu0 %v1242, 32
    %v1245 = vpop.permute.xlu0 %1244
    %v1247 = vadd.f32 %v1237, %v1245
    %v1248 = vtanh.pop %v1247
    %1250 = vrot.lane.b32.xlu0 %v1248, 64
    %v1251 = vpop.permute.xlu0 %1250
    %v1253 = vmul.f32 %v1235, %v1251
    %v1254 = vpack.c.bf16 %v1253, %v1253
    %1256 = vrot.lane.b32.xlu0 %v1254, 32
    %v1257 = vpop.permute.xlu0 %1256
    %v1259 = vsel %vm241, %v1257, 0
    %1261 = vmatprep.subr.bf16.mxu0 0
    %1262 = vmatpush1.bf16.msra.mxu0 0
    %1263 = vmatprep.subr.bf16.mxu0 0
    %1264 = vmatpush1.bf16.msra.mxu0 0
    %1265 = vmatprep.subr.bf16.mxu0 0
    %1266 = vmatpush1.bf16.msra.mxu0 0
    %1267 = vmatprep.subr.bf16.mxu0 0
    %1268 = vmatpush1.bf16.msra.mxu0 0
    %1269 = vmatprep.subr.bf16.mxu0 0
    %1270 = vmatpush1.bf16.msra.mxu0 0
    %1271 = vmatprep.subr.bf16.mxu0 0
    %1272 = vmatpush1.bf16.msra.mxu0 0
    %1273 = vmatprep.subr.bf16.mxu0 0
    %1274 = vmatpush1.bf16.msra.mxu0 %v110
    %1275 = vmatprep.subr.bf16.mxu0 0
    %1276 = vmatpush1.bf16.msra.mxu0 %v109
    %1277 = vmatprep.subr.bf16.mxu0 0
    %1278 = vmatpush2.bf16.msra.mxu0 0
    %1279 = vmatprep.subr.bf16.mxu0 0
    %1280 = vmatpush2.bf16.msra.mxu0 0
    %1281 = vmatprep.subr.bf16.mxu0 0
    %1282 = vmatpush2.bf16.msra.mxu0 0
    %1283 = vmatprep.subr.bf16.mxu0 0
    %1284 = vmatpush2.bf16.msra.mxu0 0
    %1285 = vmatprep.subr.bf16.mxu0 0
    %1286 = vmatpush2.bf16.msra.mxu0 0
    %1287 = vmatprep.subr.bf16.mxu0 0
    %1288 = vmatpush2.bf16.msra.mxu0 0
    %1289 = vmatprep.subr.bf16.mxu0 0
    %1290 = vmatpush2.bf16.msra.mxu0 0
    %1291 = vmatprep.subr.bf16.mxu0 0
    %1292 = vmatpush2.bf16.msra.mxu0 0
    %1293 = vmatprep.mubr.bf16.mxu0 0
    %1294 = vmatmul.mubr.bf16.gmra.mxu0 %v1259
    %v1295 = vpop.f32.mrf.mxu0
    %v1296 = vadd.f32 %v122, %v1295
    %v1297 = vpop.f32.mrf.mxu0
    %v1298 = vpop.f32.mrf.mxu0
    %v1299 = vpop.f32.mrf.mxu0
    %1300 = vdwg.mxu0
    %v1302 = vrot.slane %v1223, 2
    %v1303 = vrot.slane %v1223, 3
    %v1306 = vadd.f32 %v173, %v1302
    %v1307 = vadd.f32 %v176, %v1303
    %v1308 = vxor.u32 %v1306, 2147483648
    %v1309 = vxor.u32 %v1307, 2147483648
    %v1310 = vmul.f32 %v1308, 1.442695
    %v1311 = vpow.pop %v1310
    %v1312 = vmul.f32 %v1309, 1.442695
    %v1313 = vpow.pop %v1312
    %v1314 = vadd.f32 %v1311, 1.0
    %v1315 = vadd.f32 %v1313, 1.0
    %v1316 = vrcp.pop %v1314
    %v1317 = vmul.f32 1.0, %v1316
    %v1318 = vrcp.pop %v1315
    %v1319 = vmul.f32 1.0, %v1318
    %v1320 = vtanh.pop %v1306
    %v1321 = vtanh.pop %v1307
    %v1324 = vrot.slane %v1159, 7
    %v1325 = vrot.slane %v1160, 7
    %v1328 = vmul.f32 %v1317, %v1324
    %v1329 = vmul.f32 %v1319, %v1325
    %1332 = vrot.lane.b32.xlu0 %v1320, 64
    %v1333 = vpop.permute.xlu0 %1332
    %1334 = vrot.lane.b32.xlu0 %v1321, 64
    %v1335 = vpop.permute.xlu0 %1334
    %v1338 = vmul.f32 %v1317, %v1333
    %v1339 = vmul.f32 %v1319, %v1335
    %1342 = vrot.lane.b32.xlu0 %v1338, 32
    %v1343 = vpop.permute.xlu0 %1342
    %1344 = vrot.lane.b32.xlu0 %v1339, 32
    %v1345 = vpop.permute.xlu0 %1344
    %v1348 = vadd.f32 %v1328, %v1343
    %v1349 = vadd.f32 %v1329, %v1345
    %v1350 = vtanh.pop %v1348
    %v1351 = vtanh.pop %v1349
    %1354 = vrot.lane.b32.xlu0 %v1350, 64
    %v1355 = vpop.permute.xlu0 %1354
    %1356 = vrot.lane.b32.xlu0 %v1351, 64
    %v1357 = vpop.permute.xlu0 %1356
    %v1360 = vmul.f32 %v1317, %v1355
    %v1361 = vmul.f32 %v1319, %v1357
    %v1362 = vpack.c.bf16 %v1360, %v1360
    %v1363 = vpack.c.bf16 %v1361, %v1361
    %v1366 = vunpack.c.l.b16 %v1362
    %v1367 = vunpack.c.l.b16 %v1363
    %v1368 = vrot.slane %v1366, 6
    %v1369 = vrot.slane %v1367, 5
    %v1370 = vsel %vm236, %v1369, %v1368
    %v1371 = vpack.c.b16 %v1370, %v1370
    %1372 = vrot.lane.b32.xlu0 %v1371, 32
    %v1373 = vpop.permute.xlu0 %1372
    %v1375 = vsel %vm241, %v1373, 0
    %1377 = vmatprep.subr.bf16.mxu0 0
    %1378 = vmatpush1.bf16.msra.mxu0 0
    %1379 = vmatprep.subr.bf16.mxu0 0
    %1380 = vmatpush1.bf16.msra.mxu0 0
    %1381 = vmatprep.subr.bf16.mxu0 0
    %1382 = vmatpush1.bf16.msra.mxu0 0
    %1383 = vmatprep.subr.bf16.mxu0 0
    %1384 = vmatpush1.bf16.msra.mxu0 0
    %1385 = vmatprep.subr.bf16.mxu0 0
    %1386 = vmatpush1.bf16.msra.mxu0 0
    %1387 = vmatprep.subr.bf16.mxu0 0
    %1388 = vmatpush1.bf16.msra.mxu0 0
    %1389 = vmatprep.subr.bf16.mxu0 %v104
    %1390 = vmatpush1.bf16.msra.mxu0 %v103
    %1391 = vmatprep.subr.bf16.mxu0 %v102
    %1392 = vmatpush1.bf16.msra.mxu0 %v101
    %1393 = vmatprep.subr.bf16.mxu0 0
    %1394 = vmatpush2.bf16.msra.mxu0 0
    %1395 = vmatprep.subr.bf16.mxu0 0
    %1396 = vmatpush2.bf16.msra.mxu0 0
    %1397 = vmatprep.subr.bf16.mxu0 0
    %1398 = vmatpush2.bf16.msra.mxu0 0
    %1399 = vmatprep.subr.bf16.mxu0 0
    %1400 = vmatpush2.bf16.msra.mxu0 0
    %1401 = vmatprep.subr.bf16.mxu0 0
    %1402 = vmatpush2.bf16.msra.mxu0 0
    %1403 = vmatprep.subr.bf16.mxu0 0
    %1404 = vmatpush2.bf16.msra.mxu0 0
    %1405 = vmatprep.subr.bf16.mxu0 0
    %1406 = vmatpush2.bf16.msra.mxu0 0
    %1407 = vmatprep.subr.bf16.mxu0 0
    %1408 = vmatpush2.bf16.msra.mxu0 0
    %1409 = vmatprep.mubr.bf16.mxu0 0
    %1410 = vmatmul.mubr.bf16.gmra.mxu0 %v1375
    %v1411 = vpop.f32.mrf.mxu0
    %v1412 = vadd.f32 0.0, %v1411
    %v1413 = vpop.f32.mrf.mxu0
    %v1414 = vadd.f32 0.0, %v1413
    %v1415 = vpop.f32.mrf.mxu0
    %v1416 = vpop.f32.mrf.mxu0
    %1417 = vdwg.mxu0
    %v1418 = vadd.f32 %v1414, %v1296
    %v1419 = vxor.u32 %v1418, 2147483648
    %v1420 = vmul.f32 %v1419, 1.442695
    %v1421 = vpow.pop %v1420
    %v1422 = vadd.f32 %v1421, 1.0
    %v1423 = vrcp.pop %v1422
    %v1424 = vmul.f32 1.0, %v1423
    %v1425 = vtanh.pop %v1418
    %v1426 = vmul.f32 %v1424, %v1247
    %1428 = vrot.lane.b32.xlu0 %v1425, 64
    %v1429 = vpop.permute.xlu0 %1428
    %v1431 = vmul.f32 %v1424, %v1429
    %1433 = vrot.lane.b32.xlu0 %v1431, 32
    %v1434 = vpop.permute.xlu0 %1433
    %v1436 = vadd.f32 %v1426, %v1434
    %v1437 = vtanh.pop %v1436
    %1439 = vrot.lane.b32.xlu0 %v1437, 64
    %v1440 = vpop.permute.xlu0 %1439
    %v1442 = vmul.f32 %v1424, %v1440
    %v1443 = vpack.c.bf16 %v1442, %v1442
    %1445 = vrot.lane.b32.xlu0 %v1443, 32
    %v1446 = vpop.permute.xlu0 %1445
    %v1448 = vsel %vm241, %v1446, 0
    %1450 = vmatprep.subr.bf16.mxu0 0
    %1451 = vmatpush1.bf16.msra.mxu0 0
    %1452 = vmatprep.subr.bf16.mxu0 0
    %1453 = vmatpush1.bf16.msra.mxu0 0
    %1454 = vmatprep.subr.bf16.mxu0 0
    %1455 = vmatpush1.bf16.msra.mxu0 0
    %1456 = vmatprep.subr.bf16.mxu0 0
    %1457 = vmatpush1.bf16.msra.mxu0 0
    %1458 = vmatprep.subr.bf16.mxu0 0
    %1459 = vmatpush1.bf16.msra.mxu0 0
    %1460 = vmatprep.subr.bf16.mxu0 0
    %1461 = vmatpush1.bf16.msra.mxu0 0
    %1462 = vmatprep.subr.bf16.mxu0 0
    %1463 = vmatpush1.bf16.msra.mxu0 %v110
    %1464 = vmatprep.subr.bf16.mxu0 0
    %1465 = vmatpush1.bf16.msra.mxu0 %v109
    %1466 = vmatprep.subr.bf16.mxu0 0
    %1467 = vmatpush2.bf16.msra.mxu0 0
    %1468 = vmatprep.subr.bf16.mxu0 0
    %1469 = vmatpush2.bf16.msra.mxu0 0
    %1470 = vmatprep.subr.bf16.mxu0 0
    %1471 = vmatpush2.bf16.msra.mxu0 0
    %1472 = vmatprep.subr.bf16.mxu0 0
    %1473 = vmatpush2.bf16.msra.mxu0 0
    %1474 = vmatprep.subr.bf16.mxu0 0
    %1475 = vmatpush2.bf16.msra.mxu0 0
    %1476 = vmatprep.subr.bf16.mxu0 0
    %1477 = vmatpush2.bf16.msra.mxu0 0
    %1478 = vmatprep.subr.bf16.mxu0 0
    %1479 = vmatpush2.bf16.msra.mxu0 0
    %1480 = vmatprep.subr.bf16.mxu0 0
    %1481 = vmatpush2.bf16.msra.mxu0 0
    %1482 = vmatprep.mubr.bf16.mxu0 0
    %1483 = vmatmul.mubr.bf16.gmra.mxu0 %v1448
    %v1484 = vpop.f32.mrf.mxu0
    %v1485 = vadd.f32 %v122, %v1484
    %v1486 = vpop.f32.mrf.mxu0
    %v1487 = vpop.f32.mrf.mxu0
    %v1488 = vpop.f32.mrf.mxu0
    %1489 = vdwg.mxu0
    %v1491 = vrot.slane %v1412, 1
    %v1492 = vrot.slane %v1412, 2
    %v1495 = vadd.f32 %v173, %v1491
    %v1496 = vadd.f32 %v176, %v1492
    %v1497 = vxor.u32 %v1495, 2147483648
    %v1498 = vxor.u32 %v1496, 2147483648
    %v1499 = vmul.f32 %v1497, 1.442695
    %v1500 = vpow.pop %v1499
    %v1501 = vmul.f32 %v1498, 1.442695
    %v1502 = vpow.pop %v1501
    %v1503 = vadd.f32 %v1500, 1.0
    %v1504 = vadd.f32 %v1502, 1.0
    %v1505 = vrcp.pop %v1503
    %v1506 = vmul.f32 1.0, %v1505
    %v1507 = vrcp.pop %v1504
    %v1508 = vmul.f32 1.0, %v1507
    %v1509 = vtanh.pop %v1495
    %v1510 = vtanh.pop %v1496
    %v1513 = vrot.slane %v1348, 7
    %v1514 = vrot.slane %v1349, 7
    %v1517 = vmul.f32 %v1506, %v1513
    %v1518 = vmul.f32 %v1508, %v1514
    %1521 = vrot.lane.b32.xlu0 %v1509, 64
    %v1522 = vpop.permute.xlu0 %1521
    %1523 = vrot.lane.b32.xlu0 %v1510, 64
    %v1524 = vpop.permute.xlu0 %1523
    %v1527 = vmul.f32 %v1506, %v1522
    %v1528 = vmul.f32 %v1508, %v1524
    %1531 = vrot.lane.b32.xlu0 %v1527, 32
    %v1532 = vpop.permute.xlu0 %1531
    %1533 = vrot.lane.b32.xlu0 %v1528, 32
    %v1534 = vpop.permute.xlu0 %1533
    %v1537 = vadd.f32 %v1517, %v1532
    %v1538 = vadd.f32 %v1518, %v1534
    %v1539 = vtanh.pop %v1537
    %v1540 = vtanh.pop %v1538
    %1543 = vrot.lane.b32.xlu0 %v1539, 64
    %v1544 = vpop.permute.xlu0 %1543
    %1545 = vrot.lane.b32.xlu0 %v1540, 64
    %v1546 = vpop.permute.xlu0 %1545
    %v1549 = vmul.f32 %v1506, %v1544
    %v1550 = vmul.f32 %v1508, %v1546
    %v1551 = vpack.c.bf16 %v1549, %v1549
    %v1552 = vpack.c.bf16 %v1550, %v1550
    %v1555 = vunpack.c.l.b16 %v1551
    %v1556 = vunpack.c.l.b16 %v1552
    %v1557 = vrot.slane %v1555, 7
    %v1558 = vrot.slane %v1556, 6
    %v1559 = vsel %vm236, %v1558, %v1557
    %v1560 = vpack.c.b16 %v1559, %v1559
    %1561 = vrot.lane.b32.xlu0 %v1560, 32
    %v1562 = vpop.permute.xlu0 %1561
    %v1564 = vsel %vm241, %v1562, 0
    %1566 = vmatprep.subr.bf16.mxu0 0
    %1567 = vmatpush1.bf16.msra.mxu0 0
    %1568 = vmatprep.subr.bf16.mxu0 0
    %1569 = vmatpush1.bf16.msra.mxu0 0
    %1570 = vmatprep.subr.bf16.mxu0 0
    %1571 = vmatpush1.bf16.msra.mxu0 0
    %1572 = vmatprep.subr.bf16.mxu0 0
    %1573 = vmatpush1.bf16.msra.mxu0 0
    %1574 = vmatprep.subr.bf16.mxu0 0
    %1575 = vmatpush1.bf16.msra.mxu0 0
    %1576 = vmatprep.subr.bf16.mxu0 0
    %1577 = vmatpush1.bf16.msra.mxu0 0
    %1578 = vmatprep.subr.bf16.mxu0 %v104
    %1579 = vmatpush1.bf16.msra.mxu0 %v103
    %1580 = vmatprep.subr.bf16.mxu0 %v102
    %1581 = vmatpush1.bf16.msra.mxu0 %v101
    %1582 = vmatprep.subr.bf16.mxu0 0
    %1583 = vmatpush2.bf16.msra.mxu0 0
    %1584 = vmatprep.subr.bf16.mxu0 0
    %1585 = vmatpush2.bf16.msra.mxu0 0
    %1586 = vmatprep.subr.bf16.mxu0 0
    %1587 = vmatpush2.bf16.msra.mxu0 0
    %1588 = vmatprep.subr.bf16.mxu0 0
    %1589 = vmatpush2.bf16.msra.mxu0 0
    %1590 = vmatprep.subr.bf16.mxu0 0
    %1591 = vmatpush2.bf16.msra.mxu0 0
    %1592 = vmatprep.subr.bf16.mxu0 0
    %1593 = vmatpush2.bf16.msra.mxu0 0
    %1594 = vmatprep.subr.bf16.mxu0 0
    %1595 = vmatpush2.bf16.msra.mxu0 0
    %1596 = vmatprep.subr.bf16.mxu0 0
    %1597 = vmatpush2.bf16.msra.mxu0 0
    %1598 = vmatprep.mubr.bf16.mxu0 0
    %1599 = vmatmul.mubr.bf16.gmra.mxu0 %v1564
    %v1600 = vpop.f32.mrf.mxu0
    %v1601 = vpop.f32.mrf.mxu0
    %v1602 = vadd.f32 0.0, %v1601
    %v1603 = vpop.f32.mrf.mxu0
    %v1604 = vpop.f32.mrf.mxu0
    %1605 = vdwg.mxu0
    %v1606 = vadd.f32 %v1602, %v1485
    %v1607 = vxor.u32 %v1606, 2147483648
    %v1608 = vmul.f32 %v1607, 1.442695
    %v1609 = vpow.pop %v1608
    %v1610 = vadd.f32 %v1609, 1.0
    %v1611 = vrcp.pop %v1610
    %v1612 = vmul.f32 1.0, %v1611
    %v1613 = vtanh.pop %v1606
    %v1614 = vmul.f32 %v1612, %v1436
    %1616 = vrot.lane.b32.xlu0 %v1613, 64
    %v1617 = vpop.permute.xlu0 %1616
    %v1619 = vmul.f32 %v1612, %v1617
    %1621 = vrot.lane.b32.xlu0 %v1619, 32
    %v1622 = vpop.permute.xlu0 %1621
    %v1624 = vadd.f32 %v1614, %v1622
    %v1625 = vtanh.pop %v1624
    %1627 = vrot.lane.b32.xlu0 %v1625, 64
    %v1628 = vpop.permute.xlu0 %1627
    %v1630 = vmul.f32 %v1612, %v1628
    %v1631 = vpack.c.bf16 %v1630, %v1630
    %v1632 = vld [vmem:[#allocation2] sm:$0x1]
    %v1634 = vlaneseq
    %v1635 = vshrl.u32 %v1634, 7
    %v1636 = vsub.s32 0, %v1635
    %v1637 = vrot.slane %v1632, %v1636
    %1640 = vrot.lane.b32.xlu0 %v1631, 32
    %v1641 = vpop.permute.xlu0 %1640
    %v1643 = vsel %vm241, %v1641, 0
    %1645 = vmatprep.subr.bf16.mxu0 0
    %1646 = vmatpush1.bf16.msra.mxu0 0
    %1647 = vmatprep.subr.bf16.mxu0 0
    %1648 = vmatpush1.bf16.msra.mxu0 0
    %1649 = vmatprep.subr.bf16.mxu0 0
    %1650 = vmatpush1.bf16.msra.mxu0 0
    %1651 = vmatprep.subr.bf16.mxu0 0
    %1652 = vmatpush1.bf16.msra.mxu0 0
    %1653 = vmatprep.subr.bf16.mxu0 0
    %1654 = vmatpush1.bf16.msra.mxu0 0
    %1655 = vmatprep.subr.bf16.mxu0 0
    %1656 = vmatpush1.bf16.msra.mxu0 0
    %1657 = vmatprep.subr.bf16.mxu0 0
    %1658 = vmatpush1.bf16.msra.mxu0 %v116
    %1659 = vmatprep.subr.bf16.mxu0 0
    %1660 = vmatpush1.bf16.msra.mxu0 %v115
    %1661 = vmatprep.subr.bf16.mxu0 0
    %1662 = vmatpush2.bf16.msra.mxu0 0
    %1663 = vmatprep.subr.bf16.mxu0 0
    %1664 = vmatpush2.bf16.msra.mxu0 0
    %1665 = vmatprep.subr.bf16.mxu0 0
    %1666 = vmatpush2.bf16.msra.mxu0 0
    %1667 = vmatprep.subr.bf16.mxu0 0
    %1668 = vmatpush2.bf16.msra.mxu0 0
    %1669 = vmatprep.subr.bf16.mxu0 0
    %1670 = vmatpush2.bf16.msra.mxu0 0
    %1671 = vmatprep.subr.bf16.mxu0 0
    %1672 = vmatpush2.bf16.msra.mxu0 0
    %1673 = vmatprep.subr.bf16.mxu0 0
    %1674 = vmatpush2.bf16.msra.mxu0 0
    %1675 = vmatprep.subr.bf16.mxu0 0
    %1676 = vmatpush2.bf16.msra.mxu0 0
    %1677 = vmatprep.mubr.bf16.mxu0 0
    %1678 = vmatmul.mubr.bf16.gmra.mxu0 %v1643
    %v1679 = vpop.f32.mrf.mxu0
    %v1680 = vadd.f32 %v1637, %v1679
    %v1681 = vpop.f32.mrf.mxu0
    %v1682 = vpop.f32.mrf.mxu0
    %v1683 = vpop.f32.mrf.mxu0
    %1684 = vdwg.mxu0
    %vm1685 = vcmask 1024
    %1686 = vst.msk [vmem:[%s9] sm:$0x3] %vm1685, %v1680
    // Predicated region
    $region54: #{tpu_custom_call.1} parent=1 // pred_check
      _
    $region55: #{tpu_custom_call.1} parent=1 // pred_check_branch
      %1688 = sbr.rel (0) target = $region57
    $region56: #{tpu_custom_call.1} parent=1 // pred_region
      _
    $region57: #{tpu_custom_call.1} parent=1 // pred_fallthru
      _
    // Predicated region
    $region58: #{tpu_custom_call.1} parent=1 // pred_check
      _
    $region59: #{tpu_custom_call.1} parent=1 // pred_check_branch
      %1690 = sbr.rel (0) target = $region61
    $region60: #{tpu_custom_call.1} parent=1 // pred_region
      _
    $region61: #{tpu_custom_call.1} parent=1 // pred_fallthru
      _
    %1691 = vsyncpa [#allocation4], 1
    %1692 = vsyncpa [#allocation6], 1
    %1693 = vsyncpa [#allocation9], 1

</llo_original>
